<compile_context>
chip_gen: v6e
topology: v6e:2x2x1
jax: 0.10.0
libtpu: 0.0.40
codegen_flags: <defaults>
</compile_context>

<pallas_src>
import functools

import jax
import jax.numpy as jnp
from jax.experimental import pallas as pl
from jax.experimental.pallas import tpu as pltpu

EPS = 1e-5
VMEM_LIMIT = 32 * 1024 * 1024  # explicit scoped-VMEM budget; safe on v5e/v6e/v7x


# ---------------------------------------------------------------------------
# kernel helpers
# ---------------------------------------------------------------------------
def _shifted_taps(y, W):
    """Return (y at w-1, y at w+1) with zero padding at the W boundaries.

    y is (TR, C), rows flattened (n,h,w)-major with TR a multiple of W, so the
    boundary masks depend only on the row index mod W (no halo needed).
    """
    TR = y.shape[0]
    wpos = jax.lax.broadcasted_iota(jnp.int32, y.shape, 0) % W
    y_m1 = jnp.where(wpos == 0, 0.0, pltpu.roll(y, 1, axis=0))           # y at w-1
    y_p1 = jnp.where(wpos == W - 1, 0.0, pltpu.roll(y, TR - 1, axis=0))  # y at w+1
    return y_m1, y_p1


def _sum_sumsq(y):
    """One-pass BN statistics: rows = [sum, sum of squares], shape (2, C)."""
    s1 = jnp.sum(y, axis=0, keepdims=True)
    s2 = jnp.sum(y * y, axis=0, keepdims=True)
    return jnp.concatenate([s1, s2], axis=0)


# ---------------------------------------------------------------------------
# pass 1: conv1(1x3) + fused shortcut conv(1x1) -> y1_pre, ys_pre, their BN stats
# ---------------------------------------------------------------------------
def _conv1_kernel(W, Cout, x_ref, wc_ref, y1p_ref, ysp_ref, stats_ref):
    @pl.when(pl.program_id(0) == 0)
    def _():
        stats_ref[...] = jnp.zeros_like(stats_ref)

    x = x_ref[...]                                           # (TR, Cin)
    x_m1, x_p1 = _shifted_taps(x, W)
    x_cat = jnp.concatenate([x_m1, x, x_p1], axis=1)         # (TR, 3*Cin)
    # single matmul: columns [0:Cout]=conv1, [Cout:2Cout]=shortcut conv (biases dropped)
    z = jnp.dot(x_cat, wc_ref[...], preferred_element_type=jnp.float32)
    y1p_ref[...] = z[:, :Cout]
    ysp_ref[...] = z[:, Cout:]
    stats_ref[...] += _sum_sumsq(z)


# ---------------------------------------------------------------------------
# pass 2: BN1 (precomputed scale/shift) + conv2(1x3) -> y2_pre, its BN stats
# ---------------------------------------------------------------------------
def _conv2_kernel(W, y1p_ref, sc1_ref, sh1_ref, w2_ref, y2p_ref, stats_ref):
    @pl.when(pl.program_id(0) == 0)
    def _():
        stats_ref[...] = jnp.zeros_like(stats_ref)

    y1 = y1p_ref[...] * sc1_ref[...] + sh1_ref[...]          # (TR, Cout)
    y_m1, y_p1 = _shifted_taps(y1, W)
    y_cat = jnp.concatenate([y_m1, y1, y_p1], axis=1)        # (TR, 3*Cout)
    y2p = jnp.dot(y_cat, w2_ref[...], preferred_element_type=jnp.float32)
    y2p_ref[...] = y2p
    stats_ref[...] += _sum_sumsq(y2p)


# ---------------------------------------------------------------------------
# pass 3: BN2 + shortcut BN + residual add + ELU
# ---------------------------------------------------------------------------
def _finish_kernel(y2p_ref, ysp_ref, sc2_ref, sh2_ref, scs_ref, shs_ref, o_ref):
    y2 = y2p_ref[...] * sc2_ref[...] + sh2_ref[...]
    ys = ysp_ref[...] * scs_ref[...] + shs_ref[...]
    s = y2 + ys
    o_ref[...] = jnp.where(s > 0, s, jnp.exp(s) - 1.0)       # ELU(alpha=1)


# ---------------------------------------------------------------------------
# wrapper
# ---------------------------------------------------------------------------
def _conv3_mat(w):
    # PyTorch (Cout, Cin, 1, 3) -> (3*Cin, Cout); row blocks ordered taps w-1, w, w+1.
    w = jnp.transpose(w[:, :, 0, :], (2, 1, 0))              # (3, Cin, Cout)
    return w.reshape(-1, w.shape[-1]).astype(jnp.float32)


def _bn_affine(stats, gamma, beta, count):
    # stats: (2, C) rows [sum, sumsq]; biased variance (one-pass form), eps=1e-5.
    mean = stats[0] / count
    var = jnp.maximum(stats[1] / count - mean * mean, 0.0)
    scale = gamma.astype(jnp.float32) * jax.lax.rsqrt(var + EPS)
    shift = beta.astype(jnp.float32) - mean * scale
    return scale.reshape(1, -1), shift.reshape(1, -1)


def _pick_tile_rows(NH, W, target=1024):
    # Tile rows must be a multiple of W (roll+mask taps need no halo), divide N*H*W,
    # and be a multiple of 8 (sublane tiling); otherwise fall back to one full block.
    cands = [g * W for g in range(1, NH + 1) if NH % g == 0 and (g * W) % 8 == 0]
    if not cands:
        return NH * W
    under = [t for t in cands if t <= target]
    return max(under) if under else min(cands)


@jax.jit
def residual_block_pallas(x_nchw, p):
    N, Cin, H, W = x_nchw.shape
    Cout = p["w1"].shape[0]
    RW = N * H * W
    TR = _pick_tile_rows(N * H, W)
    num_tiles = RW // TR

    # NCHW -> (N*H*W, C) slab with channels on the lane axis.
    x_flat = jnp.transpose(x_nchw, (0, 2, 3, 1)).reshape(RW, Cin).astype(jnp.float32)

    # Conv weights as matmul matrices; conv biases intentionally dropped (BN cancels them).
    w1m = _conv3_mat(p["w1"])                                # (3*Cin, Cout)
    w2m = _conv3_mat(p["w2"])                                # (3*Cout, Cout)
    wsm = jnp.transpose(p["ws"][:, :, 0, 0], (1, 0)).astype(jnp.float32)   # (Cin, Cout)
    zpad = jnp.zeros((Cin, Cout), jnp.float32)
    wc = jnp.concatenate([w1m, jnp.concatenate([zpad, wsm, zpad], axis=0)],
                         axis=1)                             # (3*Cin, 2*Cout)

    row_in = pl.BlockSpec((TR, Cin), lambda i: (i, 0))
    row_c = pl.BlockSpec((TR, Cout), lambda i: (i, 0))
    small = lambda shape: pl.BlockSpec(shape, lambda i: (0, 0))

    # ---- pass 1: conv1 + fused shortcut conv, accumulate their BN stats ----
    y1p, ysp, stats1 = pl.pallas_call(
        functools.partial(_conv1_kernel, W, Cout),
        grid=(num_tiles,),
        in_specs=[row_in, small((3 * Cin, 2 * Cout))],
        out_specs=[row_c, row_c, small((2, 2 * Cout))],
        out_shape=[jax.ShapeDtypeStruct((RW, Cout), jnp.float32),
                   jax.ShapeDtypeStruct((RW, Cout), jnp.float32),
                   jax.ShapeDtypeStruct((2, 2 * Cout), jnp.float32)],
        compiler_params=pltpu.CompilerParams(
            dimension_semantics=("arbitrary",), vmem_limit_bytes=VMEM_LIMIT),
    )(x_flat, wc)

    sc1, sh1 = _bn_affine(stats1[:, :Cout], p["g1"], p["be1"], RW)
    scs, shs = _bn_affine(stats1[:, Cout:], p["gs"], p["bes"], RW)

    # ---- pass 2: BN1 + conv2, accumulate its BN stats ----
    y2p, stats2 = pl.pallas_call(
        functools.partial(_conv2_kernel, W),
        grid=(num_tiles,),
        in_specs=[row_c, small((1, Cout)), small((1, Cout)), small((3 * Cout, Cout))],
        out_specs=[row_c, small((2, Cout))],
        out_shape=[jax.ShapeDtypeStruct((RW, Cout), jnp.float32),
                   jax.ShapeDtypeStruct((2, Cout), jnp.float32)],
        compiler_params=pltpu.CompilerParams(
            dimension_semantics=("arbitrary",), vmem_limit_bytes=VMEM_LIMIT),
    )(y1p, sc1, sh1, w2m)

    sc2, sh2 = _bn_affine(stats2, p["g2"], p["be2"], RW)

    # ---- pass 3: BN2 + shortcut BN + add + ELU (tile-independent -> parallel) ----
    out_flat = pl.pallas_call(
        _finish_kernel,
        grid=(num_tiles,),
        in_specs=[row_c, row_c,
                  small((1, Cout)), small((1, Cout)),
                  small((1, Cout)), small((1, Cout))],
        out_specs=row_c,
        out_shape=jax.ShapeDtypeStruct((RW, Cout), jnp.float32),
        compiler_params=pltpu.CompilerParams(
            dimension_semantics=("parallel",), vmem_limit_bytes=VMEM_LIMIT),
    )(y2p, ysp, sc2, sh2, scs, shs)

    return jnp.transpose(out_flat.reshape(N, H, W, Cout), (0, 3, 1, 2))


# ---------------------------------------------------------------------------
# pure-JAX reference (NCHW, lax.conv) used only for correctness checking
# ---------------------------------------------------------------------------
def residual_block_ref(x, p):
    def conv(x, w, b, pad):
        y = jax.lax.conv_general_dilated(
            x, w, window_strides=(1, 1), padding=((0, 0), (pad, pad)),
            dimension_numbers=("NCHW", "OIHW", "NCHW"))
        return y + b[None, :, None, None]

    def bn(y, g, be):
        m = jnp.mean(y, axis=(0, 2, 3), keepdims=True)
        v = jnp.mean((y - m) ** 2, axis=(0, 2, 3), keepdims=True)
        return (y - m) * jax.lax.rsqrt(v + EPS) * g[None, :, None, None] \
            + be[None, :, None, None]

    left = bn(conv(x, p["w1"], p["b1"], 1), p["g1"], p["be1"])
    left = bn(conv(left, p["w2"], p["b2"], 1), p["g2"], p["be2"])
    sc = bn(conv(x, p["ws"], p["bs"], 0), p["gs"], p["bes"])
    out = left + sc
    return jnp.where(out > 0, out, jnp.exp(out) - 1.0)


if __name__ == "__main__":
    # Small shapes: batch=2, inchannel=4, outchannel=8, H=4 (electrodes), W=16 (time).
    # inchannel != outchannel so the conv+BN shortcut path is exercised.
    N, Cin, Cout, H, W = 2, 4, 8, 4, 16

    key = jax.random.PRNGKey(0)
    ks = jax.random.split(key, 13)
    p = {
        "w1": 0.1 * jax.random.normal(ks[0], (Cout, Cin, 1, 3), jnp.float32),
        "b1": 0.1 * jax.random.normal(ks[1], (Cout,), jnp.float32),
        "g1": 1.0 + 0.1 * jax.random.normal(ks[2], (Cout,), jnp.float32),
        "be1": 0.1 * jax.random.normal(ks[3], (Cout,), jnp.float32),
        "w2": 0.1 * jax.random.normal(ks[4], (Cout, Cout, 1, 3), jnp.float32),
        "b2": 0.1 * jax.random.normal(ks[5], (Cout,), jnp.float32),
        "g2": 1.0 + 0.1 * jax.random.normal(ks[6], (Cout,), jnp.float32),
        "be2": 0.1 * jax.random.normal(ks[7], (Cout,), jnp.float32),
        "ws": 0.1 * jax.random.normal(ks[8], (Cout, Cin, 1, 1), jnp.float32),
        "bs": 0.1 * jax.random.normal(ks[9], (Cout,), jnp.float32),
        "gs": 1.0 + 0.1 * jax.random.normal(ks[10], (Cout,), jnp.float32),
        "bes": 0.1 * jax.random.normal(ks[11], (Cout,), jnp.float32),
    }
    x = jax.random.normal(ks[12], (N, Cin, H, W), jnp.float32)

    out = jax.block_until_ready(residual_block_pallas(x, p))
    ref = jax.block_until_ready(residual_block_ref(x, p))

    assert out.shape == (N, Cout, H, W), out.shape
    err = float(jnp.max(jnp.abs(out - ref)))
    assert jnp.allclose(out, ref, atol=1e-4, rtol=1e-4), err
    print("KERNEL_OK")
</pallas_src>

<mosaic_0001>
module attributes {stable_mosaic.version = 11 : i64} {
  func.func @_conv2_kernel(%arg0: i32, %arg1: memref<128x8xf32, #tpu.memory_space<vmem>>, %arg2: memref<1x8xf32, #tpu.memory_space<vmem>>, %arg3: memref<1x8xf32, #tpu.memory_space<vmem>>, %arg4: memref<24x8xf32, #tpu.memory_space<vmem>>, %arg5: memref<128x8xf32, #tpu.memory_space<vmem>>, %arg6: memref<2x8xf32, #tpu.memory_space<vmem>>) attributes {dimension_semantics = [#tpu.dimension_semantics<arbitrary>], iteration_bounds = array<i64: 1>, scalar_prefetch = 0 : i64, scratch_operands = 0 : i64, tpu.core_type = #tpu.core_type<tc>, window_params = [{transform_indices = @transform_0, window_bounds = array<i64: 128, 8>}, {pipeline_mode = #tpu.pipeline_mode<synchronous>, transform_indices = @transform_1, window_bounds = array<i64: 1, 8>}, {pipeline_mode = #tpu.pipeline_mode<synchronous>, transform_indices = @transform_2, window_bounds = array<i64: 1, 8>}, {pipeline_mode = #tpu.pipeline_mode<synchronous>, transform_indices = @transform_3, window_bounds = array<i64: 24, 8>}, {transform_indices = @transform_4, window_bounds = array<i64: 128, 8>}, {pipeline_mode = #tpu.pipeline_mode<synchronous>, transform_indices = @transform_5, window_bounds = array<i64: 2, 8>}]} {
    %c0_i32 = arith.constant 0 : i32
    %0 = arith.cmpi eq, %arg0, %c0_i32 : i32
    %1 = arith.extui %0 : i1 to i32
    %c0_i32_0 = arith.constant 0 : i32
    %2 = arith.cmpi ne, %1, %c0_i32_0 : i32
    scf.if %2 {
      %cst_24 = arith.constant 0.000000e+00 : f32
      %50 = vector.broadcast %cst_24 : f32 to vector<2x8xf32>
      %c0_25 = arith.constant 0 : index
      %c0_26 = arith.constant 0 : index
      %51 = vector.load %arg6[%c0_25, %c0_26] : memref<2x8xf32, #tpu.memory_space<vmem>>, vector<2x8xf32>
      tpu.vector_store %arg6[%c0_25, %c0_26], %50 {strides = array<i32>} : memref<2x8xf32, #tpu.memory_space<vmem>>, vector<2x8xf32>,
    } else {
    }
    %c0 = arith.constant 0 : index
    %c0_1 = arith.constant 0 : index
    %3 = vector.load %arg1[%c0, %c0_1] : memref<128x8xf32, #tpu.memory_space<vmem>>, vector<128x8xf32>
    %c0_2 = arith.constant 0 : index
    %c0_3 = arith.constant 0 : index
    %4 = vector.load %arg2[%c0_2, %c0_3] : memref<1x8xf32, #tpu.memory_space<vmem>>, vector<1x8xf32>
    %5 = vector.broadcast %4 : vector<1x8xf32> to vector<128x8xf32>
    %6 = arith.mulf %3, %5 : vector<128x8xf32>
    %c0_4 = arith.constant 0 : index
    %c0_5 = arith.constant 0 : index
    %7 = vector.load %arg3[%c0_4, %c0_5] : memref<1x8xf32, #tpu.memory_space<vmem>>, vector<1x8xf32>
    %8 = vector.broadcast %7 : vector<1x8xf32> to vector<128x8xf32>
    %9 = arith.addf %6, %8 : vector<128x8xf32>
    %10 = tpu.iota {dimensions = array<i32: 0>} : vector<128x8xi32>
    %c16_i32 = arith.constant 16 : i32
    %c0_i32_6 = arith.constant 0 : i32
    %11 = arith.cmpi eq, %c16_i32, %c0_i32_6 : i32
    %c1_i32 = arith.constant 1 : i32
    %12 = arith.select %11, %c1_i32, %c16_i32 : i32
    %13 = vector.broadcast %12 : i32 to vector<128x8xi32>
    %14 = arith.remsi %10, %13 : vector<128x8xi32>
    %c0_i32_7 = arith.constant 0 : i32
    %15 = vector.broadcast %c0_i32_7 : i32 to vector<128x8xi32>
    %16 = arith.cmpi ne, %14, %15 : vector<128x8xi32>
    %c0_i32_8 = arith.constant 0 : i32
    %17 = vector.broadcast %c0_i32_8 : i32 to vector<128x8xi32>
    %18 = arith.cmpi slt, %14, %17 : vector<128x8xi32>
    %c0_i32_9 = arith.constant 0 : i32
    %19 = arith.cmpi slt, %12, %c0_i32_9 : i32
    %20 = vector.broadcast %19 : i1 to vector<128x8xi1>
    %21 = vector.broadcast %20 : vector<128x8xi1> to vector<128x8xi1>
    %22 = arith.xori %18, %21 : vector<128x8xi1>
    %23 = arith.andi %22, %16 : vector<128x8xi1>
    %24 = vector.broadcast %12 : i32 to vector<128x8xi32>
    %25 = arith.addi %14, %24 : vector<128x8xi32>
    %26 = arith.select %23, %25, %14 : vector<128x8xi1>, vector<128x8xi32>
    %c0_i32_10 = arith.constant 0 : i32
    %27 = vector.broadcast %c0_i32_10 : i32 to vector<128x8xi32>
    %28 = arith.cmpi eq, %26, %27 : vector<128x8xi32>
    %c1_i32_11 = arith.constant 1 : i32
    %29 = tpu.dynamic_rotate %9 by %c1_i32_11 dim 0 : vector<128x8xf32>, i32 -> vector<128x8xf32>
    %cst = arith.constant 0.000000e+00 : f32
    %30 = vector.broadcast %cst : f32 to vector<128x8xf32>
    %31 = arith.select %28, %30, %29 : vector<128x8xi1>, vector<128x8xf32>
    %c15_i32 = arith.constant 15 : i32
    %32 = vector.broadcast %c15_i32 : i32 to vector<128x8xi32>
    %33 = arith.cmpi eq, %26, %32 : vector<128x8xi32>
    %c127_i32 = arith.constant 127 : i32
    %34 = tpu.dynamic_rotate %9 by %c127_i32 dim 0 : vector<128x8xf32>, i32 -> vector<128x8xf32>
    %cst_12 = arith.constant 0.000000e+00 : f32
    %35 = vector.broadcast %cst_12 : f32 to vector<128x8xf32>
    %36 = arith.select %33, %35, %34 : vector<128x8xi1>, vector<128x8xf32>
    %37 = tpu.concatenate %31, %9, %36 in 1 : vector<128x8xf32>, vector<128x8xf32>, vector<128x8xf32> -> vector<128x24xf32>
    %c0_13 = arith.constant 0 : index
    %c0_14 = arith.constant 0 : index
    %38 = vector.load %arg4[%c0_13, %c0_14] : memref<24x8xf32, #tpu.memory_space<vmem>>, vector<24x8xf32>
    %cst_15 = arith.constant dense<0.000000e+00> : vector<128x8xf32>
    %39 = tpu.matmul %37, %38, %cst_15 {dimension_numbers = #tpu.dot_dimension_numbers<[1], [0], [0], [1], [0, 0, 1, 1], [], []>} : vector<128x24xf32>, vector<24x8xf32>, vector<128x8xf32> -> vector<128x8xf32>
    %c0_16 = arith.constant 0 : index
    %c0_17 = arith.constant 0 : index
    %40 = vector.load %arg5[%c0_16, %c0_17] : memref<128x8xf32, #tpu.memory_space<vmem>>, vector<128x8xf32>
    tpu.vector_store %arg5[%c0_16, %c0_17], %39 {strides = array<i32>} : memref<128x8xf32, #tpu.memory_space<vmem>>, vector<128x8xf32>,
    %c0_18 = arith.constant 0 : index
    %c0_19 = arith.constant 0 : index
    %41 = vector.load %arg6[%c0_18, %c0_19] : memref<2x8xf32, #tpu.memory_space<vmem>>, vector<2x8xf32>
    %cst_20 = arith.constant dense<0.000000e+00> : vector<8xf32>
    %42 = vector.multi_reduction <add>, %39, %cst_20 [0] : vector<128x8xf32> to vector<8xf32>
    %43 = vector.shape_cast %42 : vector<8xf32> to vector<1x8xf32>
    %44 = arith.mulf %39, %39 : vector<128x8xf32>
    %cst_21 = arith.constant dense<0.000000e+00> : vector<8xf32>
    %45 = vector.multi_reduction <add>, %44, %cst_21 [0] : vector<128x8xf32> to vector<8xf32>
    %46 = vector.shape_cast %45 : vector<8xf32> to vector<1x8xf32>
    %47 = tpu.concatenate %43, %46 in 0 : vector<1x8xf32>, vector<1x8xf32> -> vector<2x8xf32>
    %48 = arith.addf %41, %47 : vector<2x8xf32>
    %c0_22 = arith.constant 0 : index
    %c0_23 = arith.constant 0 : index
    %49 = vector.load %arg6[%c0_22, %c0_23] : memref<2x8xf32, #tpu.memory_space<vmem>>, vector<2x8xf32>
    tpu.vector_store %arg6[%c0_22, %c0_23], %48 {strides = array<i32>} : memref<2x8xf32, #tpu.memory_space<vmem>>, vector<2x8xf32>,
    return
  }
  func.func @transform_0(%arg0: i32) -> (i32, i32) {
    %c0_i32 = arith.constant 0 : i32
    %c0_i32_0 = arith.constant 0 : i32
    return %arg0, %c0_i32 : i32, i32
  }
  func.func @transform_1(%arg0: i32) -> (i32, i32) {
    %c0_i32 = arith.constant 0 : i32
    %c0_i32_0 = arith.constant 0 : i32
    %c0_i32_1 = arith.constant 0 : i32
    return %c0_i32, %c0_i32_0 : i32, i32
  }
  func.func @transform_2(%arg0: i32) -> (i32, i32) {
    %c0_i32 = arith.constant 0 : i32
    %c0_i32_0 = arith.constant 0 : i32
    %c0_i32_1 = arith.constant 0 : i32
    return %c0_i32, %c0_i32_0 : i32, i32
  }
  func.func @transform_3(%arg0: i32) -> (i32, i32) {
    %c0_i32 = arith.constant 0 : i32
    %c0_i32_0 = arith.constant 0 : i32
    %c0_i32_1 = arith.constant 0 : i32
    return %c0_i32, %c0_i32_0 : i32, i32
  }
  func.func @transform_4(%arg0: i32) -> (i32, i32) {
    %c0_i32 = arith.constant 0 : i32
    %c0_i32_0 = arith.constant 0 : i32
    return %arg0, %c0_i32 : i32, i32
  }
  func.func @transform_5(%arg0: i32) -> (i32, i32) {
    %c0_i32 = arith.constant 0 : i32
    %c0_i32_0 = arith.constant 0 : i32
    %c0_i32_1 = arith.constant 0 : i32
    return %c0_i32, %c0_i32_0 : i32, i32
  }
}

module attributes {stable_mosaic.version = 11 : i64} {
  func.func @_conv1_kernel(%arg0: i32, %arg1: memref<128x4xf32, #tpu.memory_space<vmem>>, %arg2: memref<12x16xf32, #tpu.memory_space<vmem>>, %arg3: memref<128x8xf32, #tpu.memory_space<vmem>>, %arg4: memref<128x8xf32, #tpu.memory_space<vmem>>, %arg5: memref<2x16xf32, #tpu.memory_space<vmem>>) attributes {dimension_semantics = [#tpu.dimension_semantics<arbitrary>], iteration_bounds = array<i64: 1>, scalar_prefetch = 0 : i64, scratch_operands = 0 : i64, tpu.core_type = #tpu.core_type<tc>, window_params = [{transform_indices = @transform_0, window_bounds = array<i64: 128, 4>}, {pipeline_mode = #tpu.pipeline_mode<synchronous>, transform_indices = @transform_1, window_bounds = array<i64: 12, 16>}, {transform_indices = @transform_2, window_bounds = array<i64: 128, 8>}, {transform_indices = @transform_3, window_bounds = array<i64: 128, 8>}, {pipeline_mode = #tpu.pipeline_mode<synchronous>, transform_indices = @transform_4, window_bounds = array<i64: 2, 16>}]} {
    %c0_i32 = arith.constant 0 : i32
    %0 = arith.cmpi eq, %arg0, %c0_i32 : i32
    %1 = arith.extui %0 : i1 to i32
    %c0_i32_0 = arith.constant 0 : i32
    %2 = arith.cmpi ne, %1, %c0_i32_0 : i32
    scf.if %2 {
      %cst_22 = arith.constant 0.000000e+00 : f32
      %47 = vector.broadcast %cst_22 : f32 to vector<2x16xf32>
      %c0_23 = arith.constant 0 : index
      %c0_24 = arith.constant 0 : index
      %48 = vector.load %arg5[%c0_23, %c0_24] : memref<2x16xf32, #tpu.memory_space<vmem>>, vector<2x16xf32>
      tpu.vector_store %arg5[%c0_23, %c0_24], %47 {strides = array<i32>} : memref<2x16xf32, #tpu.memory_space<vmem>>, vector<2x16xf32>,
    } else {
    }
    %c0 = arith.constant 0 : index
    %c0_1 = arith.constant 0 : index
    %3 = vector.load %arg1[%c0, %c0_1] : memref<128x4xf32, #tpu.memory_space<vmem>>, vector<128x4xf32>
    %4 = tpu.iota {dimensions = array<i32: 0>} : vector<128x4xi32>
    %c16_i32 = arith.constant 16 : i32
    %c0_i32_2 = arith.constant 0 : i32
    %5 = arith.cmpi eq, %c16_i32, %c0_i32_2 : i32
    %c1_i32 = arith.constant 1 : i32
    %6 = arith.select %5, %c1_i32, %c16_i32 : i32
    %7 = vector.broadcast %6 : i32 to vector<128x4xi32>
    %8 = arith.remsi %4, %7 : vector<128x4xi32>
    %c0_i32_3 = arith.constant 0 : i32
    %9 = vector.broadcast %c0_i32_3 : i32 to vector<128x4xi32>
    %10 = arith.cmpi ne, %8, %9 : vector<128x4xi32>
    %c0_i32_4 = arith.constant 0 : i32
    %11 = vector.broadcast %c0_i32_4 : i32 to vector<128x4xi32>
    %12 = arith.cmpi slt, %8, %11 : vector<128x4xi32>
    %c0_i32_5 = arith.constant 0 : i32
    %13 = arith.cmpi slt, %6, %c0_i32_5 : i32
    %14 = vector.broadcast %13 : i1 to vector<128x4xi1>
    %15 = vector.broadcast %14 : vector<128x4xi1> to vector<128x4xi1>
    %16 = arith.xori %12, %15 : vector<128x4xi1>
    %17 = arith.andi %16, %10 : vector<128x4xi1>
    %18 = vector.broadcast %6 : i32 to vector<128x4xi32>
    %19 = arith.addi %8, %18 : vector<128x4xi32>
    %20 = arith.select %17, %19, %8 : vector<128x4xi1>, vector<128x4xi32>
    %c0_i32_6 = arith.constant 0 : i32
    %21 = vector.broadcast %c0_i32_6 : i32 to vector<128x4xi32>
    %22 = arith.cmpi eq, %20, %21 : vector<128x4xi32>
    %c1_i32_7 = arith.constant 1 : i32
    %23 = tpu.dynamic_rotate %3 by %c1_i32_7 dim 0 : vector<128x4xf32>, i32 -> vector<128x4xf32>
    %cst = arith.constant 0.000000e+00 : f32
    %24 = vector.broadcast %cst : f32 to vector<128x4xf32>
    %25 = arith.select %22, %24, %23 : vector<128x4xi1>, vector<128x4xf32>
    %c15_i32 = arith.constant 15 : i32
    %26 = vector.broadcast %c15_i32 : i32 to vector<128x4xi32>
    %27 = arith.cmpi eq, %20, %26 : vector<128x4xi32>
    %c127_i32 = arith.constant 127 : i32
    %28 = tpu.dynamic_rotate %3 by %c127_i32 dim 0 : vector<128x4xf32>, i32 -> vector<128x4xf32>
    %cst_8 = arith.constant 0.000000e+00 : f32
    %29 = vector.broadcast %cst_8 : f32 to vector<128x4xf32>
    %30 = arith.select %27, %29, %28 : vector<128x4xi1>, vector<128x4xf32>
    %31 = tpu.concatenate %25, %3, %30 in 1 : vector<128x4xf32>, vector<128x4xf32>, vector<128x4xf32> -> vector<128x12xf32>
    %c0_9 = arith.constant 0 : index
    %c0_10 = arith.constant 0 : index
    %32 = vector.load %arg2[%c0_9, %c0_10] : memref<12x16xf32, #tpu.memory_space<vmem>>, vector<12x16xf32>
    %cst_11 = arith.constant dense<0.000000e+00> : vector<128x16xf32>
    %33 = tpu.matmul %31, %32, %cst_11 {dimension_numbers = #tpu.dot_dimension_numbers<[1], [0], [0], [1], [0, 0, 1, 1], [], []>} : vector<128x12xf32>, vector<12x16xf32>, vector<128x16xf32> -> vector<128x16xf32>
    %34 = vector.extract_strided_slice %33 {offsets = [0, 0], sizes = [128, 8], strides = [1, 1]} : vector<128x16xf32> to vector<128x8xf32>
    %c0_12 = arith.constant 0 : index
    %c0_13 = arith.constant 0 : index
    %35 = vector.load %arg3[%c0_12, %c0_13] : memref<128x8xf32, #tpu.memory_space<vmem>>, vector<128x8xf32>
    tpu.vector_store %arg3[%c0_12, %c0_13], %34 {strides = array<i32>} : memref<128x8xf32, #tpu.memory_space<vmem>>, vector<128x8xf32>,
    %36 = vector.extract_strided_slice %33 {offsets = [0, 8], sizes = [128, 8], strides = [1, 1]} : vector<128x16xf32> to vector<128x8xf32>
    %c0_14 = arith.constant 0 : index
    %c0_15 = arith.constant 0 : index
    %37 = vector.load %arg4[%c0_14, %c0_15] : memref<128x8xf32, #tpu.memory_space<vmem>>, vector<128x8xf32>
    tpu.vector_store %arg4[%c0_14, %c0_15], %36 {strides = array<i32>} : memref<128x8xf32, #tpu.memory_space<vmem>>, vector<128x8xf32>,
    %c0_16 = arith.constant 0 : index
    %c0_17 = arith.constant 0 : index
    %38 = vector.load %arg5[%c0_16, %c0_17] : memref<2x16xf32, #tpu.memory_space<vmem>>, vector<2x16xf32>
    %cst_18 = arith.constant dense<0.000000e+00> : vector<16xf32>
    %39 = vector.multi_reduction <add>, %33, %cst_18 [0] : vector<128x16xf32> to vector<16xf32>
    %40 = vector.shape_cast %39 : vector<16xf32> to vector<1x16xf32>
    %41 = arith.mulf %33, %33 : vector<128x16xf32>
    %cst_19 = arith.constant dense<0.000000e+00> : vector<16xf32>
    %42 = vector.multi_reduction <add>, %41, %cst_19 [0] : vector<128x16xf32> to vector<16xf32>
    %43 = vector.shape_cast %42 : vector<16xf32> to vector<1x16xf32>
    %44 = tpu.concatenate %40, %43 in 0 : vector<1x16xf32>, vector<1x16xf32> -> vector<2x16xf32>
    %45 = arith.addf %38, %44 : vector<2x16xf32>
    %c0_20 = arith.constant 0 : index
    %c0_21 = arith.constant 0 : index
    %46 = vector.load %arg5[%c0_20, %c0_21] : memref<2x16xf32, #tpu.memory_space<vmem>>, vector<2x16xf32>
    tpu.vector_store %arg5[%c0_20, %c0_21], %45 {strides = array<i32>} : memref<2x16xf32, #tpu.memory_space<vmem>>, vector<2x16xf32>,
    return
  }
  func.func @transform_0(%arg0: i32) -> (i32, i32) {
    %c0_i32 = arith.constant 0 : i32
    %c0_i32_0 = arith.constant 0 : i32
    return %arg0, %c0_i32 : i32, i32
  }
  func.func @transform_1(%arg0: i32) -> (i32, i32) {
    %c0_i32 = arith.constant 0 : i32
    %c0_i32_0 = arith.constant 0 : i32
    %c0_i32_1 = arith.constant 0 : i32
    return %c0_i32, %c0_i32_0 : i32, i32
  }
  func.func @transform_2(%arg0: i32) -> (i32, i32) {
    %c0_i32 = arith.constant 0 : i32
    %c0_i32_0 = arith.constant 0 : i32
    return %arg0, %c0_i32 : i32, i32
  }
  func.func @transform_3(%arg0: i32) -> (i32, i32) {
    %c0_i32 = arith.constant 0 : i32
    %c0_i32_0 = arith.constant 0 : i32
    return %arg0, %c0_i32 : i32, i32
  }
  func.func @transform_4(%arg0: i32) -> (i32, i32) {
    %c0_i32 = arith.constant 0 : i32
    %c0_i32_0 = arith.constant 0 : i32
    %c0_i32_1 = arith.constant 0 : i32
    return %c0_i32, %c0_i32_0 : i32, i32
  }
}

module attributes {stable_mosaic.version = 11 : i64} {
  func.func @_finish_kernel(%arg0: i32, %arg1: memref<128x8xf32, #tpu.memory_space<vmem>>, %arg2: memref<128x8xf32, #tpu.memory_space<vmem>>, %arg3: memref<1x8xf32, #tpu.memory_space<vmem>>, %arg4: memref<1x8xf32, #tpu.memory_space<vmem>>, %arg5: memref<1x8xf32, #tpu.memory_space<vmem>>, %arg6: memref<1x8xf32, #tpu.memory_space<vmem>>, %arg7: memref<128x8xf32, #tpu.memory_space<vmem>>) attributes {dimension_semantics = [#tpu.dimension_semantics<parallel>], iteration_bounds = array<i64: 1>, scalar_prefetch = 0 : i64, scratch_operands = 0 : i64, tpu.core_type = #tpu.core_type<tc>, window_params = [{transform_indices = @transform_0, window_bounds = array<i64: 128, 8>}, {transform_indices = @transform_1, window_bounds = array<i64: 128, 8>}, {pipeline_mode = #tpu.pipeline_mode<synchronous>, transform_indices = @transform_2, window_bounds = array<i64: 1, 8>}, {pipeline_mode = #tpu.pipeline_mode<synchronous>, transform_indices = @transform_3, window_bounds = array<i64: 1, 8>}, {pipeline_mode = #tpu.pipeline_mode<synchronous>, transform_indices = @transform_4, window_bounds = array<i64: 1, 8>}, {pipeline_mode = #tpu.pipeline_mode<synchronous>, transform_indices = @transform_5, window_bounds = array<i64: 1, 8>}, {transform_indices = @transform_6, window_bounds = array<i64: 128, 8>}]} {
    %c0 = arith.constant 0 : index
    %c0_0 = arith.constant 0 : index
    %0 = vector.load %arg1[%c0, %c0_0] : memref<128x8xf32, #tpu.memory_space<vmem>>, vector<128x8xf32>
    %c0_1 = arith.constant 0 : index
    %c0_2 = arith.constant 0 : index
    %1 = vector.load %arg3[%c0_1, %c0_2] : memref<1x8xf32, #tpu.memory_space<vmem>>, vector<1x8xf32>
    %2 = vector.broadcast %1 : vector<1x8xf32> to vector<128x8xf32>
    %3 = arith.mulf %0, %2 : vector<128x8xf32>
    %c0_3 = arith.constant 0 : index
    %c0_4 = arith.constant 0 : index
    %4 = vector.load %arg4[%c0_3, %c0_4] : memref<1x8xf32, #tpu.memory_space<vmem>>, vector<1x8xf32>
    %5 = vector.broadcast %4 : vector<1x8xf32> to vector<128x8xf32>
    %6 = arith.addf %3, %5 : vector<128x8xf32>
    %c0_5 = arith.constant 0 : index
    %c0_6 = arith.constant 0 : index
    %7 = vector.load %arg2[%c0_5, %c0_6] : memref<128x8xf32, #tpu.memory_space<vmem>>, vector<128x8xf32>
    %c0_7 = arith.constant 0 : index
    %c0_8 = arith.constant 0 : index
    %8 = vector.load %arg5[%c0_7, %c0_8] : memref<1x8xf32, #tpu.memory_space<vmem>>, vector<1x8xf32>
    %9 = vector.broadcast %8 : vector<1x8xf32> to vector<128x8xf32>
    %10 = arith.mulf %7, %9 : vector<128x8xf32>
    %c0_9 = arith.constant 0 : index
    %c0_10 = arith.constant 0 : index
    %11 = vector.load %arg6[%c0_9, %c0_10] : memref<1x8xf32, #tpu.memory_space<vmem>>, vector<1x8xf32>
    %12 = vector.broadcast %11 : vector<1x8xf32> to vector<128x8xf32>
    %13 = arith.addf %10, %12 : vector<128x8xf32>
    %14 = arith.addf %6, %13 : vector<128x8xf32>
    %cst = arith.constant 0.000000e+00 : f32
    %15 = vector.broadcast %cst : f32 to vector<128x8xf32>
    %16 = arith.cmpf ogt, %14, %15 : vector<128x8xf32>
    %17 = math.exp %14 : vector<128x8xf32>
    %cst_11 = arith.constant 1.000000e+00 : f32
    %18 = vector.broadcast %cst_11 : f32 to vector<128x8xf32>
    %19 = arith.subf %17, %18 : vector<128x8xf32>
    %20 = arith.select %16, %14, %19 : vector<128x8xi1>, vector<128x8xf32>
    %c0_12 = arith.constant 0 : index
    %c0_13 = arith.constant 0 : index
    %21 = vector.load %arg7[%c0_12, %c0_13] : memref<128x8xf32, #tpu.memory_space<vmem>>, vector<128x8xf32>
    tpu.vector_store %arg7[%c0_12, %c0_13], %20 {strides = array<i32>} : memref<128x8xf32, #tpu.memory_space<vmem>>, vector<128x8xf32>,
    return
  }
  func.func @transform_0(%arg0: i32) -> (i32, i32) {
    %c0_i32 = arith.constant 0 : i32
    %c0_i32_0 = arith.constant 0 : i32
    return %arg0, %c0_i32 : i32, i32
  }
  func.func @transform_1(%arg0: i32) -> (i32, i32) {
    %c0_i32 = arith.constant 0 : i32
    %c0_i32_0 = arith.constant 0 : i32
    return %arg0, %c0_i32 : i32, i32
  }
  func.func @transform_2(%arg0: i32) -> (i32, i32) {
    %c0_i32 = arith.constant 0 : i32
    %c0_i32_0 = arith.constant 0 : i32
    %c0_i32_1 = arith.constant 0 : i32
    return %c0_i32, %c0_i32_0 : i32, i32
  }
  func.func @transform_3(%arg0: i32) -> (i32, i32) {
    %c0_i32 = arith.constant 0 : i32
    %c0_i32_0 = arith.constant 0 : i32
    %c0_i32_1 = arith.constant 0 : i32
    return %c0_i32, %c0_i32_0 : i32, i32
  }
  func.func @transform_4(%arg0: i32) -> (i32, i32) {
    %c0_i32 = arith.constant 0 : i32
    %c0_i32_0 = arith.constant 0 : i32
    %c0_i32_1 = arith.constant 0 : i32
    return %c0_i32, %c0_i32_0 : i32, i32
  }
  func.func @transform_5(%arg0: i32) -> (i32, i32) {
    %c0_i32 = arith.constant 0 : i32
    %c0_i32_0 = arith.constant 0 : i32
    %c0_i32_1 = arith.constant 0 : i32
    return %c0_i32, %c0_i32_0 : i32, i32
  }
  func.func @transform_6(%arg0: i32) -> (i32, i32) {
    %c0_i32 = arith.constant 0 : i32
    %c0_i32_0 = arith.constant 0 : i32
    return %arg0, %c0_i32 : i32, i32
  }
}

</mosaic_0001>

<llo_original>
// kernel: residual_block_pallas.5
$region0: #{residual_block_pallas.5}
  #allocation0 [shape = 'u32[]', space=smem, size = 0x4, offset = 0x4, fixed_abs, tag = 'smem constant byte address 0x4 - core index']
  #allocation1 [shape = 'u32[144,128]{1,0:T(1,128)}', space=vmem, size = 0x12000, scoped, tag = 'internal scratch']
  %s0 = inlined_call_operand.vmem [shape: f32[128,8], index: 0, kind: input, shape index: {}]
  %s1 = inlined_call_operand.vmem [shape: f32[128,8], index: 1, kind: input, shape index: {}]
  %s2 = inlined_call_operand.vmem [shape: f32[1,8], index: 2, kind: input, shape index: {}]
  %s3 = inlined_call_operand.vmem [shape: f32[1,8], index: 3, kind: input, shape index: {}]
  %s4 = inlined_call_operand.vmem [shape: f32[1,8], index: 4, kind: input, shape index: {}]
  %s5 = inlined_call_operand.vmem [shape: f32[1,8], index: 5, kind: input, shape index: {}]
  %s6 = inlined_call_operand.vmem [shape: f32[128,8], index: 6, kind: output, shape index: {}]
  %s7 = sld [smem:[#allocation0]]
  $region34: #{residual_block_pallas.5} parent=0
    _
  %s9 = ssub.s32 1, %s7
  %s10 = scalar_select 0, %s9, %s7
  // Predicated region
  $region2: #{residual_block_pallas.5} parent=0 // pred_check
    _
  $region3: #{residual_block_pallas.5} parent=0 // pred_check_branch
    %12 = sbr.rel (0) target = $region5
  $region4: #{residual_block_pallas.5} parent=0 // pred_region
    _
  $region5: #{residual_block_pallas.5} parent=0 // pred_fallthru
    _
  // Predicated region
  $region6: #{residual_block_pallas.5} parent=0 // pred_check
    _
  $region7: #{residual_block_pallas.5} parent=0 // pred_check_branch
    %14 = sbr.rel (0) target = $region9
  $region8: #{residual_block_pallas.5} parent=0 // pred_region
    _
  $region9: #{residual_block_pallas.5} parent=0 // pred_fallthru
    _
  // Predicated region
  $region10: #{residual_block_pallas.5} parent=0 // pred_check
    _
  $region11: #{residual_block_pallas.5} parent=0 // pred_check_branch
    %16 = sbr.rel (0) target = $region13
  $region12: #{residual_block_pallas.5} parent=0 // pred_region
    _
  $region13: #{residual_block_pallas.5} parent=0 // pred_fallthru
    _
  // Predicated region
  $region14: #{residual_block_pallas.5} parent=0 // pred_check
    _
  $region15: #{residual_block_pallas.5} parent=0 // pred_check_branch
    %18 = sbr.rel (0) target = $region17
  $region16: #{residual_block_pallas.5} parent=0 // pred_region
    _
  $region17: #{residual_block_pallas.5} parent=0 // pred_fallthru
    _
  // Predicated region
  $region18: #{residual_block_pallas.5} parent=0 // pred_check
    _
  $region19: #{residual_block_pallas.5} parent=0 // pred_check_branch
    %20 = sbr.rel (0) target = $region21
  $region20: #{residual_block_pallas.5} parent=0 // pred_region
    _
  $region21: #{residual_block_pallas.5} parent=0 // pred_fallthru
    _
  // Predicated region
  $region22: #{residual_block_pallas.5} parent=0 // pred_check
    _
  $region23: #{residual_block_pallas.5} parent=0 // pred_check_branch
    %22 = sbr.rel (0) target = $region25
  $region24: #{residual_block_pallas.5} parent=0 // pred_region
    _
  $region25: #{residual_block_pallas.5} parent=0 // pred_fallthru
    _
  %v23 = vld [vmem:[%s0] sm:$0xff]
  %v24 = vld [vmem:[%s0 + $0x8] sm:$0xff]
  %v25 = vld [vmem:[%s0 + $0x10] sm:$0xff]
  %v26 = vld [vmem:[%s0 + $0x18] sm:$0xff]
  %v27 = vld [vmem:[%s0 + $0x20] sm:$0xff]
  %v28 = vld [vmem:[%s0 + $0x28] sm:$0xff]
  %v29 = vld [vmem:[%s0 + $0x30] sm:$0xff]
  %v30 = vld [vmem:[%s0 + $0x38] sm:$0xff]
  %v31 = vld [vmem:[%s0 + $0x40] sm:$0xff]
  %v32 = vld [vmem:[%s0 + $0x48] sm:$0xff]
  %v33 = vld [vmem:[%s0 + $0x50] sm:$0xff]
  %v34 = vld [vmem:[%s0 + $0x58] sm:$0xff]
  %v35 = vld [vmem:[%s0 + $0x60] sm:$0xff]
  %v36 = vld [vmem:[%s0 + $0x68] sm:$0xff]
  %v37 = vld [vmem:[%s0 + $0x70] sm:$0xff]
  %v38 = vld [vmem:[%s0 + $0x78] sm:$0xff]
  %v39 = vld [vmem:[%s2] sm:$0x1]
  %v41 = vlaneseq
  %v42 = vshrl.u32 %v41, 7
  %v43 = vsub.s32 0, %v42
  %v44 = vrot.slane %v39, %v43
  %v46 = vmul.f32 %v23, %v44
  %v47 = vmul.f32 %v24, %v44
  %v48 = vmul.f32 %v25, %v44
  %v49 = vmul.f32 %v26, %v44
  %v50 = vmul.f32 %v27, %v44
  %v51 = vmul.f32 %v28, %v44
  %v52 = vmul.f32 %v29, %v44
  %v53 = vmul.f32 %v30, %v44
  %v54 = vmul.f32 %v31, %v44
  %v55 = vmul.f32 %v32, %v44
  %v56 = vmul.f32 %v33, %v44
  %v57 = vmul.f32 %v34, %v44
  %v58 = vmul.f32 %v35, %v44
  %v59 = vmul.f32 %v36, %v44
  %v60 = vmul.f32 %v37, %v44
  %v61 = vmul.f32 %v38, %v44
  %v62 = vld [vmem:[%s3] sm:$0x1]
  %v64 = vlaneseq
  %v65 = vshrl.u32 %v64, 7
  %v66 = vsub.s32 0, %v65
  %v67 = vrot.slane %v62, %v66
  %v69 = vadd.f32 %v46, %v67
  %v70 = vadd.f32 %v47, %v67
  %v71 = vadd.f32 %v48, %v67
  %v72 = vadd.f32 %v49, %v67
  %v73 = vadd.f32 %v50, %v67
  %v74 = vadd.f32 %v51, %v67
  %v75 = vadd.f32 %v52, %v67
  %v76 = vadd.f32 %v53, %v67
  %v77 = vadd.f32 %v54, %v67
  %v78 = vadd.f32 %v55, %v67
  %v79 = vadd.f32 %v56, %v67
  %v80 = vadd.f32 %v57, %v67
  %v81 = vadd.f32 %v58, %v67
  %v82 = vadd.f32 %v59, %v67
  %v83 = vadd.f32 %v60, %v67
  %v84 = vadd.f32 %v61, %v67
  %v85 = vld [vmem:[%s1] sm:$0xff]
  %v86 = vld [vmem:[%s1 + $0x8] sm:$0xff]
  %v87 = vld [vmem:[%s1 + $0x10] sm:$0xff]
  %v88 = vld [vmem:[%s1 + $0x18] sm:$0xff]
  %v89 = vld [vmem:[%s1 + $0x20] sm:$0xff]
  %v90 = vld [vmem:[%s1 + $0x28] sm:$0xff]
  %v91 = vld [vmem:[%s1 + $0x30] sm:$0xff]
  %v92 = vld [vmem:[%s1 + $0x38] sm:$0xff]
  %v93 = vld [vmem:[%s1 + $0x40] sm:$0xff]
  %v94 = vld [vmem:[%s1 + $0x48] sm:$0xff]
  %v95 = vld [vmem:[%s1 + $0x50] sm:$0xff]
  %v96 = vld [vmem:[%s1 + $0x58] sm:$0xff]
  %v97 = vld [vmem:[%s1 + $0x60] sm:$0xff]
  %v98 = vld [vmem:[%s1 + $0x68] sm:$0xff]
  %v99 = vld [vmem:[%s1 + $0x70] sm:$0xff]
  %v100 = vld [vmem:[%s1 + $0x78] sm:$0xff]
  %v101 = vld [vmem:[%s4] sm:$0x1]
  %v103 = vlaneseq
  %v104 = vshrl.u32 %v103, 7
  %v105 = vsub.s32 0, %v104
  %v106 = vrot.slane %v101, %v105
  %v108 = vmul.f32 %v85, %v106
  %v109 = vmul.f32 %v86, %v106
  %v110 = vmul.f32 %v87, %v106
  %v111 = vmul.f32 %v88, %v106
  %v112 = vmul.f32 %v89, %v106
  %v113 = vmul.f32 %v90, %v106
  %v114 = vmul.f32 %v91, %v106
  %v115 = vmul.f32 %v92, %v106
  %v116 = vmul.f32 %v93, %v106
  %v117 = vmul.f32 %v94, %v106
  %v118 = vmul.f32 %v95, %v106
  %v119 = vmul.f32 %v96, %v106
  %v120 = vmul.f32 %v97, %v106
  %v121 = vmul.f32 %v98, %v106
  %v122 = vmul.f32 %v99, %v106
  %v123 = vmul.f32 %v100, %v106
  %v124 = vld [vmem:[%s5] sm:$0x1]
  %v126 = vlaneseq
  %v127 = vshrl.u32 %v126, 7
  %v128 = vsub.s32 0, %v127
  %v129 = vrot.slane %v124, %v128
  %v131 = vadd.f32 %v108, %v129
  %v132 = vadd.f32 %v109, %v129
  %v133 = vadd.f32 %v110, %v129
  %v134 = vadd.f32 %v111, %v129
  %v135 = vadd.f32 %v112, %v129
  %v136 = vadd.f32 %v113, %v129
  %v137 = vadd.f32 %v114, %v129
  %v138 = vadd.f32 %v115, %v129
  %v139 = vadd.f32 %v116, %v129
  %v140 = vadd.f32 %v117, %v129
  %v141 = vadd.f32 %v118, %v129
  %v142 = vadd.f32 %v119, %v129
  %v143 = vadd.f32 %v120, %v129
  %v144 = vadd.f32 %v121, %v129
  %v145 = vadd.f32 %v122, %v129
  %v146 = vadd.f32 %v123, %v129
  %v147 = vadd.f32 %v69, %v131
  %v148 = vadd.f32 %v70, %v132
  %v149 = vadd.f32 %v71, %v133
  %v150 = vadd.f32 %v72, %v134
  %v151 = vadd.f32 %v73, %v135
  %v152 = vadd.f32 %v74, %v136
  %v153 = vadd.f32 %v75, %v137
  %v154 = vadd.f32 %v76, %v138
  %v155 = vadd.f32 %v77, %v139
  %v156 = vadd.f32 %v78, %v140
  %v157 = vadd.f32 %v79, %v141
  %v158 = vadd.f32 %v80, %v142
  %v159 = vadd.f32 %v81, %v143
  %v160 = vadd.f32 %v82, %v144
  %v161 = vadd.f32 %v83, %v145
  %v162 = vadd.f32 %v84, %v146
  %vm163 = vcmp.gt.f32.partialorder %v147, 0.0
  %vm164 = vcmp.gt.f32.partialorder %v148, 0.0
  %vm165 = vcmp.gt.f32.partialorder %v149, 0.0
  %vm166 = vcmp.gt.f32.partialorder %v150, 0.0
  %vm167 = vcmp.gt.f32.partialorder %v151, 0.0
  %vm168 = vcmp.gt.f32.partialorder %v152, 0.0
  %vm169 = vcmp.gt.f32.partialorder %v153, 0.0
  %vm170 = vcmp.gt.f32.partialorder %v154, 0.0
  %vm171 = vcmp.gt.f32.partialorder %v155, 0.0
  %vm172 = vcmp.gt.f32.partialorder %v156, 0.0
  %vm173 = vcmp.gt.f32.partialorder %v157, 0.0
  %vm174 = vcmp.gt.f32.partialorder %v158, 0.0
  %vm175 = vcmp.gt.f32.partialorder %v159, 0.0
  %vm176 = vcmp.gt.f32.partialorder %v160, 0.0
  %vm177 = vcmp.gt.f32.partialorder %v161, 0.0
  %vm178 = vcmp.gt.f32.partialorder %v162, 0.0
  %v179 = vmul.f32 %v147, 1.442695
  %v180 = vpow.pop %v179
  %v181 = vmul.f32 %v148, 1.442695
  %v182 = vpow.pop %v181
  %v183 = vmul.f32 %v149, 1.442695
  %v184 = vpow.pop %v183
  %v185 = vmul.f32 %v150, 1.442695
  %v186 = vpow.pop %v185
  %v187 = vmul.f32 %v151, 1.442695
  %v188 = vpow.pop %v187
  %v189 = vmul.f32 %v152, 1.442695
  %v190 = vpow.pop %v189
  %v191 = vmul.f32 %v153, 1.442695
  %v192 = vpow.pop %v191
  %v193 = vmul.f32 %v154, 1.442695
  %v194 = vpow.pop %v193
  %v195 = vmul.f32 %v155, 1.442695
  %v196 = vpow.pop %v195
  %v197 = vmul.f32 %v156, 1.442695
  %v198 = vpow.pop %v197
  %v199 = vmul.f32 %v157, 1.442695
  %v200 = vpow.pop %v199
  %v201 = vmul.f32 %v158, 1.442695
  %v202 = vpow.pop %v201
  %v203 = vmul.f32 %v159, 1.442695
  %v204 = vpow.pop %v203
  %v205 = vmul.f32 %v160, 1.442695
  %v206 = vpow.pop %v205
  %v207 = vmul.f32 %v161, 1.442695
  %v208 = vpow.pop %v207
  %v209 = vmul.f32 %v162, 1.442695
  %v210 = vpow.pop %v209
  %v211 = vsub.f32 %v180, 1.0
  %v212 = vsub.f32 %v182, 1.0
  %v213 = vsub.f32 %v184, 1.0
  %v214 = vsub.f32 %v186, 1.0
  %v215 = vsub.f32 %v188, 1.0
  %v216 = vsub.f32 %v190, 1.0
  %v217 = vsub.f32 %v192, 1.0
  %v218 = vsub.f32 %v194, 1.0
  %v219 = vsub.f32 %v196, 1.0
  %v220 = vsub.f32 %v198, 1.0
  %v221 = vsub.f32 %v200, 1.0
  %v222 = vsub.f32 %v202, 1.0
  %v223 = vsub.f32 %v204, 1.0
  %v224 = vsub.f32 %v206, 1.0
  %v225 = vsub.f32 %v208, 1.0
  %v226 = vsub.f32 %v210, 1.0
  %v227 = vsel %vm163, %v147, %v211
  %v228 = vsel %vm164, %v148, %v212
  %v229 = vsel %vm165, %v149, %v213
  %v230 = vsel %vm166, %v150, %v214
  %v231 = vsel %vm167, %v151, %v215
  %v232 = vsel %vm168, %v152, %v216
  %v233 = vsel %vm169, %v153, %v217
  %v234 = vsel %vm170, %v154, %v218
  %v235 = vsel %vm171, %v155, %v219
  %v236 = vsel %vm172, %v156, %v220
  %v237 = vsel %vm173, %v157, %v221
  %v238 = vsel %vm174, %v158, %v222
  %v239 = vsel %vm175, %v159, %v223
  %v240 = vsel %vm176, %v160, %v224
  %v241 = vsel %vm177, %v161, %v225
  %v242 = vsel %vm178, %v162, %v226
  %vm243 = vcmask 64512
  %244 = vst.msk [vmem:[%s6] sm:$0xff] %vm243, %v227
  %245 = vst.msk [vmem:[%s6 + $0x8] sm:$0xff] %vm243, %v228
  %246 = vst.msk [vmem:[%s6 + $0x10] sm:$0xff] %vm243, %v229
  %247 = vst.msk [vmem:[%s6 + $0x18] sm:$0xff] %vm243, %v230
  %248 = vst.msk [vmem:[%s6 + $0x20] sm:$0xff] %vm243, %v231
  %249 = vst.msk [vmem:[%s6 + $0x28] sm:$0xff] %vm243, %v232
  %250 = vst.msk [vmem:[%s6 + $0x30] sm:$0xff] %vm243, %v233
  %251 = vst.msk [vmem:[%s6 + $0x38] sm:$0xff] %vm243, %v234
  %252 = vst.msk [vmem:[%s6 + $0x40] sm:$0xff] %vm243, %v235
  %253 = vst.msk [vmem:[%s6 + $0x48] sm:$0xff] %vm243, %v236
  %254 = vst.msk [vmem:[%s6 + $0x50] sm:$0xff] %vm243, %v237
  %255 = vst.msk [vmem:[%s6 + $0x58] sm:$0xff] %vm243, %v238
  %256 = vst.msk [vmem:[%s6 + $0x60] sm:$0xff] %vm243, %v239
  %257 = vst.msk [vmem:[%s6 + $0x68] sm:$0xff] %vm243, %v240
  %258 = vst.msk [vmem:[%s6 + $0x70] sm:$0xff] %vm243, %v241
  %259 = vst.msk [vmem:[%s6 + $0x78] sm:$0xff] %vm243, %v242
  // Predicated region
  $region26: #{residual_block_pallas.5} parent=0 // pred_check
    _
  $region27: #{residual_block_pallas.5} parent=0 // pred_check_branch
    %261 = sbr.rel (0) target = $region29
  $region28: #{residual_block_pallas.5} parent=0 // pred_region
    _
  $region29: #{residual_block_pallas.5} parent=0 // pred_fallthru
    _
  // Predicated region
  $region30: #{residual_block_pallas.5} parent=0 // pred_check
    _
  $region31: #{residual_block_pallas.5} parent=0 // pred_check_branch
    %263 = sbr.rel (0) target = $region33
  $region32: #{residual_block_pallas.5} parent=0 // pred_region
    _
  $region33: #{residual_block_pallas.5} parent=0 // pred_fallthru
    _

// kernel: residual_block_pallas.3
$region0: #{residual_block_pallas.3}
  #allocation0 [shape = 'u32[]', space=smem, size = 0x4, offset = 0x4, fixed_abs, tag = 'smem constant byte address 0x4 - core index']
  #allocation1 [shape = 'u32[144,128]{1,0:T(1,128)}', space=vmem, size = 0x12000, scoped, tag = 'internal scratch']
  %s0 = inlined_call_operand.vmem [shape: f32[128,4], index: 0, kind: input, shape index: {}]
  %s1 = inlined_call_operand.vmem [shape: f32[12,16], index: 1, kind: input, shape index: {}]
  %s2 = inlined_call_operand.vmem [shape: f32[128,8], index: 2, kind: output, shape index: {0}]
  %s3 = inlined_call_operand.vmem [shape: f32[128,8], index: 3, kind: output, shape index: {1}]
  %s4 = inlined_call_operand.vmem [shape: f32[2,16], index: 4, kind: output, shape index: {2}]
  %5 = xla_tuple %s2, %s3, %s4
  %s6 = sld [smem:[#allocation0]]
  $region38: #{residual_block_pallas.3} parent=0
    _
  %s8 = ssub.s32 1, %s6
  %s9 = scalar_select 0, %s8, %s6
  // Predicated region
  $region2: #{residual_block_pallas.3} parent=0 // pred_check
    _
  $region3: #{residual_block_pallas.3} parent=0 // pred_check_branch
    %11 = sbr.rel (0) target = $region5
  $region4: #{residual_block_pallas.3} parent=0 // pred_region
    _
  $region5: #{residual_block_pallas.3} parent=0 // pred_fallthru
    _
  // Predicated region
  $region6: #{residual_block_pallas.3} parent=0 // pred_check
    _
  $region7: #{residual_block_pallas.3} parent=0 // pred_check_branch
    %13 = sbr.rel (0) target = $region9
  $region8: #{residual_block_pallas.3} parent=0 // pred_region
    _
  $region9: #{residual_block_pallas.3} parent=0 // pred_fallthru
    _
  %p14 = scmp.eq.s32.totalorder 0, 0
  // Predicated region
  $region10: #{residual_block_pallas.3} parent=0 // pred_check
    %p15 = pneg %p14
  $region11: #{residual_block_pallas.3} parent=0 // pred_check_branch
    %17 = sbr.rel (%p15) target = $region13
  $region12: #{residual_block_pallas.3} parent=0 // pred_region
    %vm18 = vcmask 123904
    %19 = vst.msk [vmem:[%s4] sm:$0x3] %vm18, 0.0
  $region13: #{residual_block_pallas.3} parent=0 // pred_fallthru
    _
  %v20 = vld [vmem:[%s0] sm:$0xff]
  %v21 = vld [vmem:[%s0 + $0x8] sm:$0xff]
  %v22 = vld [vmem:[%s0 + $0x10] sm:$0xff]
  %v23 = vld [vmem:[%s0 + $0x18] sm:$0xff]
  %v24 = vld [vmem:[%s0 + $0x20] sm:$0xff]
  %v25 = vld [vmem:[%s0 + $0x28] sm:$0xff]
  %v26 = vld [vmem:[%s0 + $0x30] sm:$0xff]
  %v27 = vld [vmem:[%s0 + $0x38] sm:$0xff]
  %v28 = vld [vmem:[%s0 + $0x40] sm:$0xff]
  %v29 = vld [vmem:[%s0 + $0x48] sm:$0xff]
  %v30 = vld [vmem:[%s0 + $0x50] sm:$0xff]
  %v31 = vld [vmem:[%s0 + $0x58] sm:$0xff]
  %v32 = vld [vmem:[%s0 + $0x60] sm:$0xff]
  %v33 = vld [vmem:[%s0 + $0x68] sm:$0xff]
  %v34 = vld [vmem:[%s0 + $0x70] sm:$0xff]
  %v35 = vld [vmem:[%s0 + $0x78] sm:$0xff]
  %v36 = vlaneseq
  %v37 = vshrl.u32 %v36, 7
  %v38 = vadd.s32 %v37, 8
  %v39 = vadd.s32 %v37, 16
  %v40 = vadd.s32 %v37, 24
  %v41 = vadd.s32 %v37, 32
  %v42 = vadd.s32 %v37, 40
  %v43 = vadd.s32 %v37, 48
  %v44 = vadd.s32 %v37, 56
  %v45 = vadd.s32 %v37, 64
  %v46 = vadd.s32 %v37, 72
  %v47 = vadd.s32 %v37, 80
  %v48 = vadd.s32 %v37, 88
  %v49 = vadd.s32 %v37, 96
  %v50 = vadd.s32 %v37, 104
  %v51 = vadd.s32 %v37, 112
  %v52 = vadd.s32 %v37, 120
  %vm53 = vcmp.lt.s32.totalorder %v37, 0
  %v54 = vsub.s32 0, %v37
  %v55 = vsel %vm53, %v54, %v37
  %v56 = vshrl.u32 %v55, 4
  %v57 = vand.u32 %v55, 15
  %v58 = vsub.s32 0, %v57
  %v59 = vsel %vm53, %v58, %v57
  %vm60 = vcmp.lt.s32.totalorder %v38, 0
  %v61 = vsub.s32 0, %v38
  %v62 = vsel %vm60, %v61, %v38
  %v63 = vshrl.u32 %v62, 4
  %v64 = vand.u32 %v62, 15
  %v65 = vsub.s32 0, %v64
  %v66 = vsel %vm60, %v65, %v64
  %vm67 = vcmp.lt.s32.totalorder %v39, 0
  %v68 = vsub.s32 0, %v39
  %v69 = vsel %vm67, %v68, %v39
  %v70 = vshrl.u32 %v69, 4
  %v71 = vand.u32 %v69, 15
  %v72 = vsub.s32 0, %v71
  %v73 = vsel %vm67, %v72, %v71
  %vm74 = vcmp.lt.s32.totalorder %v40, 0
  %v75 = vsub.s32 0, %v40
  %v76 = vsel %vm74, %v75, %v40
  %v77 = vshrl.u32 %v76, 4
  %v78 = vand.u32 %v76, 15
  %v79 = vsub.s32 0, %v78
  %v80 = vsel %vm74, %v79, %v78
  %vm81 = vcmp.lt.s32.totalorder %v41, 0
  %v82 = vsub.s32 0, %v41
  %v83 = vsel %vm81, %v82, %v41
  %v84 = vshrl.u32 %v83, 4
  %v85 = vand.u32 %v83, 15
  %v86 = vsub.s32 0, %v85
  %v87 = vsel %vm81, %v86, %v85
  %vm88 = vcmp.lt.s32.totalorder %v42, 0
  %v89 = vsub.s32 0, %v42
  %v90 = vsel %vm88, %v89, %v42
  %v91 = vshrl.u32 %v90, 4
  %v92 = vand.u32 %v90, 15
  %v93 = vsub.s32 0, %v92
  %v94 = vsel %vm88, %v93, %v92
  %vm95 = vcmp.lt.s32.totalorder %v43, 0
  %v96 = vsub.s32 0, %v43
  %v97 = vsel %vm95, %v96, %v43
  %v98 = vshrl.u32 %v97, 4
  %v99 = vand.u32 %v97, 15
  %v100 = vsub.s32 0, %v99
  %v101 = vsel %vm95, %v100, %v99
  %vm102 = vcmp.lt.s32.totalorder %v44, 0
  %v103 = vsub.s32 0, %v44
  %v104 = vsel %vm102, %v103, %v44
  %v105 = vshrl.u32 %v104, 4
  %v106 = vand.u32 %v104, 15
  %v107 = vsub.s32 0, %v106
  %v108 = vsel %vm102, %v107, %v106
  %vm109 = vcmp.lt.s32.totalorder %v45, 0
  %v110 = vsub.s32 0, %v45
  %v111 = vsel %vm109, %v110, %v45
  %v112 = vshrl.u32 %v111, 4
  %v113 = vand.u32 %v111, 15
  %v114 = vsub.s32 0, %v113
  %v115 = vsel %vm109, %v114, %v113
  %vm116 = vcmp.lt.s32.totalorder %v46, 0
  %v117 = vsub.s32 0, %v46
  %v118 = vsel %vm116, %v117, %v46
  %v119 = vshrl.u32 %v118, 4
  %v120 = vand.u32 %v118, 15
  %v121 = vsub.s32 0, %v120
  %v122 = vsel %vm116, %v121, %v120
  %vm123 = vcmp.lt.s32.totalorder %v47, 0
  %v124 = vsub.s32 0, %v47
  %v125 = vsel %vm123, %v124, %v47
  %v126 = vshrl.u32 %v125, 4
  %v127 = vand.u32 %v125, 15
  %v128 = vsub.s32 0, %v127
  %v129 = vsel %vm123, %v128, %v127
  %vm130 = vcmp.lt.s32.totalorder %v48, 0
  %v131 = vsub.s32 0, %v48
  %v132 = vsel %vm130, %v131, %v48
  %v133 = vshrl.u32 %v132, 4
  %v134 = vand.u32 %v132, 15
  %v135 = vsub.s32 0, %v134
  %v136 = vsel %vm130, %v135, %v134
  %vm137 = vcmp.lt.s32.totalorder %v49, 0
  %v138 = vsub.s32 0, %v49
  %v139 = vsel %vm137, %v138, %v49
  %v140 = vshrl.u32 %v139, 4
  %v141 = vand.u32 %v139, 15
  %v142 = vsub.s32 0, %v141
  %v143 = vsel %vm137, %v142, %v141
  %vm144 = vcmp.lt.s32.totalorder %v50, 0
  %v145 = vsub.s32 0, %v50
  %v146 = vsel %vm144, %v145, %v50
  %v147 = vshrl.u32 %v146, 4
  %v148 = vand.u32 %v146, 15
  %v149 = vsub.s32 0, %v148
  %v150 = vsel %vm144, %v149, %v148
  %vm151 = vcmp.lt.s32.totalorder %v51, 0
  %v152 = vsub.s32 0, %v51
  %v153 = vsel %vm151, %v152, %v51
  %v154 = vshrl.u32 %v153, 4
  %v155 = vand.u32 %v153, 15
  %v156 = vsub.s32 0, %v155
  %v157 = vsel %vm151, %v156, %v155
  %vm158 = vcmp.lt.s32.totalorder %v52, 0
  %v159 = vsub.s32 0, %v52
  %v160 = vsel %vm158, %v159, %v52
  %v161 = vshrl.u32 %v160, 4
  %v162 = vand.u32 %v160, 15
  %v163 = vsub.s32 0, %v162
  %v164 = vsel %vm158, %v163, %v162
  %vm165 = vcmp.ne.s32.totalorder %v59, 0
  %vm166 = vcmp.ne.s32.totalorder %v66, 0
  %vm167 = vcmp.ne.s32.totalorder %v73, 0
  %vm168 = vcmp.ne.s32.totalorder %v80, 0
  %vm169 = vcmp.ne.s32.totalorder %v87, 0
  %vm170 = vcmp.ne.s32.totalorder %v94, 0
  %vm171 = vcmp.ne.s32.totalorder %v101, 0
  %vm172 = vcmp.ne.s32.totalorder %v108, 0
  %vm173 = vcmp.ne.s32.totalorder %v115, 0
  %vm174 = vcmp.ne.s32.totalorder %v122, 0
  %vm175 = vcmp.ne.s32.totalorder %v129, 0
  %vm176 = vcmp.ne.s32.totalorder %v136, 0
  %vm177 = vcmp.ne.s32.totalorder %v143, 0
  %vm178 = vcmp.ne.s32.totalorder %v150, 0
  %vm179 = vcmp.ne.s32.totalorder %v157, 0
  %vm180 = vcmp.ne.s32.totalorder %v164, 0
  %vm181 = vcmp.lt.s32.totalorder %v59, 0
  %vm182 = vcmp.lt.s32.totalorder %v66, 0
  %vm183 = vcmp.lt.s32.totalorder %v73, 0
  %vm184 = vcmp.lt.s32.totalorder %v80, 0
  %vm185 = vcmp.lt.s32.totalorder %v87, 0
  %vm186 = vcmp.lt.s32.totalorder %v94, 0
  %vm187 = vcmp.lt.s32.totalorder %v101, 0
  %vm188 = vcmp.lt.s32.totalorder %v108, 0
  %vm189 = vcmp.lt.s32.totalorder %v115, 0
  %vm190 = vcmp.lt.s32.totalorder %v122, 0
  %vm191 = vcmp.lt.s32.totalorder %v129, 0
  %vm192 = vcmp.lt.s32.totalorder %v136, 0
  %vm193 = vcmp.lt.s32.totalorder %v143, 0
  %vm194 = vcmp.lt.s32.totalorder %v150, 0
  %vm195 = vcmp.lt.s32.totalorder %v157, 0
  %vm196 = vcmp.lt.s32.totalorder %v164, 0
  %vm197 = vmand %vm181, %vm165
  %vm198 = vmand %vm182, %vm166
  %vm199 = vmand %vm183, %vm167
  %vm200 = vmand %vm184, %vm168
  %vm201 = vmand %vm185, %vm169
  %vm202 = vmand %vm186, %vm170
  %vm203 = vmand %vm187, %vm171
  %vm204 = vmand %vm188, %vm172
  %vm205 = vmand %vm189, %vm173
  %vm206 = vmand %vm190, %vm174
  %vm207 = vmand %vm191, %vm175
  %vm208 = vmand %vm192, %vm176
  %vm209 = vmand %vm193, %vm177
  %vm210 = vmand %vm194, %vm178
  %vm211 = vmand %vm195, %vm179
  %vm212 = vmand %vm196, %vm180
  %v213 = vadd.s32 %v59, 16
  %v214 = vadd.s32 %v66, 16
  %v215 = vadd.s32 %v73, 16
  %v216 = vadd.s32 %v80, 16
  %v217 = vadd.s32 %v87, 16
  %v218 = vadd.s32 %v94, 16
  %v219 = vadd.s32 %v101, 16
  %v220 = vadd.s32 %v108, 16
  %v221 = vadd.s32 %v115, 16
  %v222 = vadd.s32 %v122, 16
  %v223 = vadd.s32 %v129, 16
  %v224 = vadd.s32 %v136, 16
  %v225 = vadd.s32 %v143, 16
  %v226 = vadd.s32 %v150, 16
  %v227 = vadd.s32 %v157, 16
  %v228 = vadd.s32 %v164, 16
  %v229 = vsel %vm197, %v213, %v59
  %v230 = vsel %vm198, %v214, %v66
  %v231 = vsel %vm199, %v215, %v73
  %v232 = vsel %vm200, %v216, %v80
  %v233 = vsel %vm201, %v217, %v87
  %v234 = vsel %vm202, %v218, %v94
  %v235 = vsel %vm203, %v219, %v101
  %v236 = vsel %vm204, %v220, %v108
  %v237 = vsel %vm205, %v221, %v115
  %v238 = vsel %vm206, %v222, %v122
  %v239 = vsel %vm207, %v223, %v129
  %v240 = vsel %vm208, %v224, %v136
  %v241 = vsel %vm209, %v225, %v143
  %v242 = vsel %vm210, %v226, %v150
  %v243 = vsel %vm211, %v227, %v157
  %v244 = vsel %vm212, %v228, %v164
  %vm245 = vcmp.eq.s32.totalorder %v229, 0
  %vm246 = vcmp.eq.s32.totalorder %v230, 0
  %vm247 = vcmp.eq.s32.totalorder %v231, 0
  %vm248 = vcmp.eq.s32.totalorder %v232, 0
  %vm249 = vcmp.eq.s32.totalorder %v233, 0
  %vm250 = vcmp.eq.s32.totalorder %v234, 0
  %vm251 = vcmp.eq.s32.totalorder %v235, 0
  %vm252 = vcmp.eq.s32.totalorder %v236, 0
  %vm253 = vcmp.eq.s32.totalorder %v237, 0
  %vm254 = vcmp.eq.s32.totalorder %v238, 0
  %vm255 = vcmp.eq.s32.totalorder %v239, 0
  %vm256 = vcmp.eq.s32.totalorder %v240, 0
  %vm257 = vcmp.eq.s32.totalorder %v241, 0
  %vm258 = vcmp.eq.s32.totalorder %v242, 0
  %vm259 = vcmp.eq.s32.totalorder %v243, 0
  %vm260 = vcmp.eq.s32.totalorder %v244, 0
  %v261 = vrot.slane %v20, 7
  %v262 = vrot.slane %v21, 7
  %v263 = vrot.slane %v22, 7
  %v264 = vrot.slane %v23, 7
  %v265 = vrot.slane %v24, 7
  %v266 = vrot.slane %v25, 7
  %v267 = vrot.slane %v26, 7
  %v268 = vrot.slane %v27, 7
  %v269 = vrot.slane %v28, 7
  %v270 = vrot.slane %v29, 7
  %v271 = vrot.slane %v30, 7
  %v272 = vrot.slane %v31, 7
  %v273 = vrot.slane %v32, 7
  %v274 = vrot.slane %v33, 7
  %v275 = vrot.slane %v34, 7
  %v276 = vrot.slane %v35, 7
  %vm277 = vcmp.lt.s32.totalorder %v37, 1
  %v278 = vsel %vm277, %v275, %v276
  %v279 = vsel %vm277, %v274, %v275
  %v280 = vsel %vm277, %v273, %v274
  %v281 = vsel %vm277, %v272, %v273
  %v282 = vsel %vm277, %v271, %v272
  %v283 = vsel %vm277, %v270, %v271
  %v284 = vsel %vm277, %v269, %v270
  %v285 = vsel %vm277, %v268, %v269
  %v286 = vsel %vm277, %v267, %v268
  %v287 = vsel %vm277, %v266, %v267
  %v288 = vsel %vm277, %v265, %v266
  %v289 = vsel %vm277, %v264, %v265
  %v290 = vsel %vm277, %v263, %v264
  %v291 = vsel %vm277, %v262, %v263
  %v292 = vsel %vm277, %v261, %v262
  %v293 = vsel %vm277, %v276, %v261
  %v294 = vsel %vm245, 0.0, %v293
  %v295 = vsel %vm246, 0.0, %v292
  %v296 = vsel %vm247, 0.0, %v291
  %v297 = vsel %vm248, 0.0, %v290
  %v298 = vsel %vm249, 0.0, %v289
  %v299 = vsel %vm250, 0.0, %v288
  %v300 = vsel %vm251, 0.0, %v287
  %v301 = vsel %vm252, 0.0, %v286
  %v302 = vsel %vm253, 0.0, %v285
  %v303 = vsel %vm254, 0.0, %v284
  %v304 = vsel %vm255, 0.0, %v283
  %v305 = vsel %vm256, 0.0, %v282
  %v306 = vsel %vm257, 0.0, %v281
  %v307 = vsel %vm258, 0.0, %v280
  %v308 = vsel %vm259, 0.0, %v279
  %v309 = vsel %vm260, 0.0, %v278
  %vm310 = vcmp.eq.s32.totalorder %v229, 15
  %vm311 = vcmp.eq.s32.totalorder %v230, 15
  %vm312 = vcmp.eq.s32.totalorder %v231, 15
  %vm313 = vcmp.eq.s32.totalorder %v232, 15
  %vm314 = vcmp.eq.s32.totalorder %v233, 15
  %vm315 = vcmp.eq.s32.totalorder %v234, 15
  %vm316 = vcmp.eq.s32.totalorder %v235, 15
  %vm317 = vcmp.eq.s32.totalorder %v236, 15
  %vm318 = vcmp.eq.s32.totalorder %v237, 15
  %vm319 = vcmp.eq.s32.totalorder %v238, 15
  %vm320 = vcmp.eq.s32.totalorder %v239, 15
  %vm321 = vcmp.eq.s32.totalorder %v240, 15
  %vm322 = vcmp.eq.s32.totalorder %v241, 15
  %vm323 = vcmp.eq.s32.totalorder %v242, 15
  %vm324 = vcmp.eq.s32.totalorder %v243, 15
  %vm325 = vcmp.eq.s32.totalorder %v244, 15
  %v326 = vrot.slane %v20, 1
  %v327 = vrot.slane %v21, 1
  %v328 = vrot.slane %v22, 1
  %v329 = vrot.slane %v23, 1
  %v330 = vrot.slane %v24, 1
  %v331 = vrot.slane %v25, 1
  %v332 = vrot.slane %v26, 1
  %v333 = vrot.slane %v27, 1
  %v334 = vrot.slane %v28, 1
  %v335 = vrot.slane %v29, 1
  %v336 = vrot.slane %v30, 1
  %v337 = vrot.slane %v31, 1
  %v338 = vrot.slane %v32, 1
  %v339 = vrot.slane %v33, 1
  %v340 = vrot.slane %v34, 1
  %v341 = vrot.slane %v35, 1
  %vm342 = vcmp.lt.s32.totalorder %v37, 7
  %v343 = vsel %vm342, %v340, %v341
  %v344 = vsel %vm342, %v339, %v340
  %v345 = vsel %vm342, %v338, %v339
  %v346 = vsel %vm342, %v337, %v338
  %v347 = vsel %vm342, %v336, %v337
  %v348 = vsel %vm342, %v335, %v336
  %v349 = vsel %vm342, %v334, %v335
  %v350 = vsel %vm342, %v333, %v334
  %v351 = vsel %vm342, %v332, %v333
  %v352 = vsel %vm342, %v331, %v332
  %v353 = vsel %vm342, %v330, %v331
  %v354 = vsel %vm342, %v329, %v330
  %v355 = vsel %vm342, %v328, %v329
  %v356 = vsel %vm342, %v327, %v328
  %v357 = vsel %vm342, %v326, %v327
  %v358 = vsel %vm342, %v341, %v326
  %v359 = vsel %vm310, 0.0, %v357
  %v360 = vsel %vm311, 0.0, %v356
  %v361 = vsel %vm312, 0.0, %v355
  %v362 = vsel %vm313, 0.0, %v354
  %v363 = vsel %vm314, 0.0, %v353
  %v364 = vsel %vm315, 0.0, %v352
  %v365 = vsel %vm316, 0.0, %v351
  %v366 = vsel %vm317, 0.0, %v350
  %v367 = vsel %vm318, 0.0, %v349
  %v368 = vsel %vm319, 0.0, %v348
  %v369 = vsel %vm320, 0.0, %v347
  %v370 = vsel %vm321, 0.0, %v346
  %v371 = vsel %vm322, 0.0, %v345
  %v372 = vsel %vm323, 0.0, %v344
  %v373 = vsel %vm324, 0.0, %v343
  %v374 = vsel %vm325, 0.0, %v358
  %391 = vrot.lane.b32.xlu0 %v20, 4
  %v392 = vpop.permute.xlu0 %391
  %393 = vrot.lane.b32.xlu0 %v21, 4
  %v394 = vpop.permute.xlu0 %393
  %395 = vrot.lane.b32.xlu0 %v22, 4
  %v396 = vpop.permute.xlu0 %395
  %397 = vrot.lane.b32.xlu0 %v23, 4
  %v398 = vpop.permute.xlu0 %397
  %399 = vrot.lane.b32.xlu0 %v24, 4
  %v400 = vpop.permute.xlu0 %399
  %401 = vrot.lane.b32.xlu0 %v25, 4
  %v402 = vpop.permute.xlu0 %401
  %403 = vrot.lane.b32.xlu0 %v26, 4
  %v404 = vpop.permute.xlu0 %403
  %405 = vrot.lane.b32.xlu0 %v27, 4
  %v406 = vpop.permute.xlu0 %405
  %407 = vrot.lane.b32.xlu0 %v28, 4
  %v408 = vpop.permute.xlu0 %407
  %409 = vrot.lane.b32.xlu0 %v29, 4
  %v410 = vpop.permute.xlu0 %409
  %411 = vrot.lane.b32.xlu0 %v30, 4
  %v412 = vpop.permute.xlu0 %411
  %413 = vrot.lane.b32.xlu0 %v31, 4
  %v414 = vpop.permute.xlu0 %413
  %415 = vrot.lane.b32.xlu0 %v32, 4
  %v416 = vpop.permute.xlu0 %415
  %417 = vrot.lane.b32.xlu0 %v33, 4
  %v418 = vpop.permute.xlu0 %417
  %419 = vrot.lane.b32.xlu0 %v34, 4
  %v420 = vpop.permute.xlu0 %419
  %421 = vrot.lane.b32.xlu0 %v35, 4
  %v422 = vpop.permute.xlu0 %421
  %455 = vrot.lane.b32.xlu0 %v359, 8
  %v456 = vpop.permute.xlu0 %455
  %457 = vrot.lane.b32.xlu0 %v360, 8
  %v458 = vpop.permute.xlu0 %457
  %459 = vrot.lane.b32.xlu0 %v361, 8
  %v460 = vpop.permute.xlu0 %459
  %461 = vrot.lane.b32.xlu0 %v362, 8
  %v462 = vpop.permute.xlu0 %461
  %463 = vrot.lane.b32.xlu0 %v363, 8
  %v464 = vpop.permute.xlu0 %463
  %465 = vrot.lane.b32.xlu0 %v364, 8
  %v466 = vpop.permute.xlu0 %465
  %467 = vrot.lane.b32.xlu0 %v365, 8
  %v468 = vpop.permute.xlu0 %467
  %469 = vrot.lane.b32.xlu0 %v366, 8
  %v470 = vpop.permute.xlu0 %469
  %471 = vrot.lane.b32.xlu0 %v367, 8
  %v472 = vpop.permute.xlu0 %471
  %473 = vrot.lane.b32.xlu0 %v368, 8
  %v474 = vpop.permute.xlu0 %473
  %475 = vrot.lane.b32.xlu0 %v369, 8
  %v476 = vpop.permute.xlu0 %475
  %477 = vrot.lane.b32.xlu0 %v370, 8
  %v478 = vpop.permute.xlu0 %477
  %479 = vrot.lane.b32.xlu0 %v371, 8
  %v480 = vpop.permute.xlu0 %479
  %481 = vrot.lane.b32.xlu0 %v372, 8
  %v482 = vpop.permute.xlu0 %481
  %483 = vrot.lane.b32.xlu0 %v373, 8
  %v484 = vpop.permute.xlu0 %483
  %485 = vrot.lane.b32.xlu0 %v374, 8
  %v486 = vpop.permute.xlu0 %485
  %vm503 = vcmask 31744
  %v504 = vsel %vm503, %v294, %v392
  %v505 = vsel %vm503, %v295, %v394
  %v506 = vsel %vm503, %v296, %v396
  %v507 = vsel %vm503, %v297, %v398
  %v508 = vsel %vm503, %v298, %v400
  %v509 = vsel %vm503, %v299, %v402
  %v510 = vsel %vm503, %v300, %v404
  %v511 = vsel %vm503, %v301, %v406
  %v512 = vsel %vm503, %v302, %v408
  %v513 = vsel %vm503, %v303, %v410
  %v514 = vsel %vm503, %v304, %v412
  %v515 = vsel %vm503, %v305, %v414
  %v516 = vsel %vm503, %v306, %v416
  %v517 = vsel %vm503, %v307, %v418
  %v518 = vsel %vm503, %v308, %v420
  %v519 = vsel %vm503, %v309, %v422
  %vm520 = vcmask 64512
  %v521 = vsel %vm520, %v504, %v456
  %v522 = vsel %vm520, %v505, %v458
  %v523 = vsel %vm520, %v506, %v460
  %v524 = vsel %vm520, %v507, %v462
  %v525 = vsel %vm520, %v508, %v464
  %v526 = vsel %vm520, %v509, %v466
  %v527 = vsel %vm520, %v510, %v468
  %v528 = vsel %vm520, %v511, %v470
  %v529 = vsel %vm520, %v512, %v472
  %v530 = vsel %vm520, %v513, %v474
  %v531 = vsel %vm520, %v514, %v476
  %v532 = vsel %vm520, %v515, %v478
  %v533 = vsel %vm520, %v516, %v480
  %v534 = vsel %vm520, %v517, %v482
  %v535 = vsel %vm520, %v518, %v484
  %v536 = vsel %vm520, %v519, %v486
  %v537 = vld [vmem:[%s1] sm:$0xff]
  %v538 = vld [vmem:[%s1 + $0x8] sm:$0xf]
  %vm539 = vcmask 97280
  %v541 = vsel %vm539, %v521, 0
  %v544 = vsel %vm539, %v522, 0
  %v547 = vsel %vm539, %v523, 0
  %v550 = vsel %vm539, %v524, 0
  %v553 = vsel %vm539, %v525, 0
  %v556 = vsel %vm539, %v526, 0
  %v559 = vsel %vm539, %v527, 0
  %v562 = vsel %vm539, %v528, 0
  %v565 = vsel %vm539, %v529, 0
  %v568 = vsel %vm539, %v530, 0
  %v571 = vsel %vm539, %v531, 0
  %v574 = vsel %vm539, %v532, 0
  %v577 = vsel %vm539, %v533, 0
  %v580 = vsel %vm539, %v534, 0
  %v583 = vsel %vm539, %v535, 0
  %v586 = vsel %vm539, %v536, 0
  %vm588 = vcmask 1043456
  %v590 = vsel %vm588, %v538, 0
  %592 = vmatprep.subr.mxu0 0.0
  %593 = vmatpush1.msra.mxu0 0.0
  %594 = vmatprep.subr.mxu0 0.0
  %595 = vmatpush1.msra.mxu0 0.0
  %596 = vmatprep.subr.mxu0 0.0
  %597 = vmatpush1.msra.mxu0 0.0
  %598 = vmatprep.subr.mxu0 0.0
  %599 = vmatpush1.msra.mxu0 0.0
  %600 = vmatprep.subr.mxu0 0.0
  %601 = vmatpush1.msra.mxu0 0.0
  %602 = vmatprep.subr.mxu0 0.0
  %603 = vmatpush1.msra.mxu0 0.0
  %604 = vmatprep.subr.mxu0 0.0
  %605 = vmatpush1.msra.mxu0 0.0
  %606 = vmatprep.subr.mxu0 0.0
  %607 = vmatpush1.msra.mxu0 0.0
  %608 = vmatprep.subr.mxu0 0.0
  %609 = vmatpush1.msra.mxu0 0.0
  %610 = vmatprep.subr.mxu0 0.0
  %611 = vmatpush1.msra.mxu0 0.0
  %612 = vmatprep.subr.mxu0 0.0
  %613 = vmatpush1.msra.mxu0 0.0
  %614 = vmatprep.subr.mxu0 0.0
  %615 = vmatpush1.msra.mxu0 0.0
  %616 = vmatprep.subr.mxu0 0.0
  %617 = vmatpush1.msra.mxu0 0.0
  %618 = vmatprep.subr.mxu0 0.0
  %619 = vmatpush1.msra.mxu0 0.0
  %620 = vmatprep.subr.mxu0 0.0
  %621 = vmatpush1.msra.mxu0 %v590
  %622 = vmatprep.subr.mxu0 0.0
  %623 = vmatpush1.msra.mxu0 %v537
  %624 = vmatprep.subr.mxu0 0.0
  %625 = vmatpush2.msra.mxu0 0.0
  %626 = vmatprep.subr.mxu0 0.0
  %627 = vmatpush2.msra.mxu0 0.0
  %628 = vmatprep.subr.mxu0 0.0
  %629 = vmatpush2.msra.mxu0 0.0
  %630 = vmatprep.subr.mxu0 0.0
  %631 = vmatpush2.msra.mxu0 0.0
  %632 = vmatprep.subr.mxu0 0.0
  %633 = vmatpush2.msra.mxu0 0.0
  %634 = vmatprep.subr.mxu0 0.0
  %635 = vmatpush2.msra.mxu0 0.0
  %636 = vmatprep.subr.mxu0 0.0
  %637 = vmatpush2.msra.mxu0 0.0
  %638 = vmatprep.subr.mxu0 0.0
  %639 = vmatpush2.msra.mxu0 0.0
  %640 = vmatprep.subr.mxu0 0.0
  %641 = vmatpush2.msra.mxu0 0.0
  %642 = vmatprep.subr.mxu0 0.0
  %643 = vmatpush2.msra.mxu0 0.0
  %644 = vmatprep.subr.mxu0 0.0
  %645 = vmatpush2.msra.mxu0 0.0
  %646 = vmatprep.subr.mxu0 0.0
  %647 = vmatpush2.msra.mxu0 0.0
  %648 = vmatprep.subr.mxu0 0.0
  %649 = vmatpush2.msra.mxu0 0.0
  %650 = vmatprep.subr.mxu0 0.0
  %651 = vmatpush2.msra.mxu0 0.0
  %652 = vmatprep.subr.mxu0 0.0
  %653 = vmatpush2.msra.mxu0 0.0
  %654 = vmatprep.subr.mxu0 0.0
  %655 = vmatpush2.msra.mxu0 0.0
  %656 = vmatprep.mubr.f32.mxu0 0.0
  %657 = vmatmul.mubr.f32.gmra.mxu0 %v541
  %v658 = vpop.f32.mrf.mxu0
  %v659 = vadd.f32 0.0, %v658
  %v660 = vpop.f32.mrf.mxu0
  %661 = vmatprep.mubr.f32.mxu0 0.0
  %662 = vmatmul.mubr.f32.gmra.mxu0 %v544
  %v663 = vpop.f32.mrf.mxu0
  %v664 = vadd.f32 0.0, %v663
  %v665 = vpop.f32.mrf.mxu0
  %666 = vmatprep.mubr.f32.mxu0 0.0
  %667 = vmatmul.mubr.f32.gmra.mxu0 %v547
  %v668 = vpop.f32.mrf.mxu0
  %v669 = vadd.f32 0.0, %v668
  %v670 = vpop.f32.mrf.mxu0
  %671 = vmatprep.mubr.f32.mxu0 0.0
  %672 = vmatmul.mubr.f32.gmra.mxu0 %v550
  %v673 = vpop.f32.mrf.mxu0
  %v674 = vadd.f32 0.0, %v673
  %v675 = vpop.f32.mrf.mxu0
  %676 = vmatprep.mubr.f32.mxu0 0.0
  %677 = vmatmul.mubr.f32.gmra.mxu0 %v553
  %v678 = vpop.f32.mrf.mxu0
  %v679 = vadd.f32 0.0, %v678
  %v680 = vpop.f32.mrf.mxu0
  %681 = vmatprep.mubr.f32.mxu0 0.0
  %682 = vmatmul.mubr.f32.gmra.mxu0 %v556
  %v683 = vpop.f32.mrf.mxu0
  %v684 = vadd.f32 0.0, %v683
  %v685 = vpop.f32.mrf.mxu0
  %686 = vmatprep.mubr.f32.mxu0 0.0
  %687 = vmatmul.mubr.f32.gmra.mxu0 %v559
  %v688 = vpop.f32.mrf.mxu0
  %v689 = vadd.f32 0.0, %v688
  %v690 = vpop.f32.mrf.mxu0
  %691 = vmatprep.mubr.f32.mxu0 0.0
  %692 = vmatmul.mubr.f32.gmra.mxu0 %v562
  %v693 = vpop.f32.mrf.mxu0
  %v694 = vadd.f32 0.0, %v693
  %v695 = vpop.f32.mrf.mxu0
  %696 = vmatprep.mubr.f32.mxu0 0.0
  %697 = vmatmul.mubr.f32.gmra.mxu0 %v565
  %v698 = vpop.f32.mrf.mxu0
  %v699 = vadd.f32 0.0, %v698
  %v700 = vpop.f32.mrf.mxu0
  %701 = vmatprep.mubr.f32.mxu0 0.0
  %702 = vmatmul.mubr.f32.gmra.mxu0 %v568
  %v703 = vpop.f32.mrf.mxu0
  %v704 = vadd.f32 0.0, %v703
  %v705 = vpop.f32.mrf.mxu0
  %706 = vmatprep.mubr.f32.mxu0 0.0
  %707 = vmatmul.mubr.f32.gmra.mxu0 %v571
  %v708 = vpop.f32.mrf.mxu0
  %v709 = vadd.f32 0.0, %v708
  %v710 = vpop.f32.mrf.mxu0
  %711 = vmatprep.mubr.f32.mxu0 0.0
  %712 = vmatmul.mubr.f32.gmra.mxu0 %v574
  %v713 = vpop.f32.mrf.mxu0
  %v714 = vadd.f32 0.0, %v713
  %v715 = vpop.f32.mrf.mxu0
  %716 = vmatprep.mubr.f32.mxu0 0.0
  %717 = vmatmul.mubr.f32.gmra.mxu0 %v577
  %v718 = vpop.f32.mrf.mxu0
  %v719 = vadd.f32 0.0, %v718
  %v720 = vpop.f32.mrf.mxu0
  %721 = vmatprep.mubr.f32.mxu0 0.0
  %722 = vmatmul.mubr.f32.gmra.mxu0 %v580
  %v723 = vpop.f32.mrf.mxu0
  %v724 = vadd.f32 0.0, %v723
  %v725 = vpop.f32.mrf.mxu0
  %726 = vmatprep.mubr.f32.mxu0 0.0
  %727 = vmatmul.mubr.f32.gmra.mxu0 %v583
  %v728 = vpop.f32.mrf.mxu0
  %v729 = vadd.f32 0.0, %v728
  %v730 = vpop.f32.mrf.mxu0
  %731 = vmatprep.mubr.f32.mxu0 0.0
  %732 = vmatmul.mubr.f32.gmra.mxu0 %v586
  %v733 = vpop.f32.mrf.mxu0
  %v734 = vadd.f32 0.0, %v733
  %v735 = vpop.f32.mrf.mxu0
  %736 = vdwg.mxu0
  %737 = vst.msk [vmem:[%s2] sm:$0xff] %vm520, %v659
  %738 = vst.msk [vmem:[%s2 + $0x8] sm:$0xff] %vm520, %v664
  %739 = vst.msk [vmem:[%s2 + $0x10] sm:$0xff] %vm520, %v669
  %740 = vst.msk [vmem:[%s2 + $0x18] sm:$0xff] %vm520, %v674
  %741 = vst.msk [vmem:[%s2 + $0x20] sm:$0xff] %vm520, %v679
  %742 = vst.msk [vmem:[%s2 + $0x28] sm:$0xff] %vm520, %v684
  %743 = vst.msk [vmem:[%s2 + $0x30] sm:$0xff] %vm520, %v689
  %744 = vst.msk [vmem:[%s2 + $0x38] sm:$0xff] %vm520, %v694
  %745 = vst.msk [vmem:[%s2 + $0x40] sm:$0xff] %vm520, %v699
  %746 = vst.msk [vmem:[%s2 + $0x48] sm:$0xff] %vm520, %v704
  %747 = vst.msk [vmem:[%s2 + $0x50] sm:$0xff] %vm520, %v709
  %748 = vst.msk [vmem:[%s2 + $0x58] sm:$0xff] %vm520, %v714
  %749 = vst.msk [vmem:[%s2 + $0x60] sm:$0xff] %vm520, %v719
  %750 = vst.msk [vmem:[%s2 + $0x68] sm:$0xff] %vm520, %v724
  %751 = vst.msk [vmem:[%s2 + $0x70] sm:$0xff] %vm520, %v729
  %752 = vst.msk [vmem:[%s2 + $0x78] sm:$0xff] %vm520, %v734
  %769 = vrot.lane.b32.xlu0 %v659, 120
  %v770 = vpop.permute.xlu0 %769
  %771 = vrot.lane.b32.xlu0 %v664, 120
  %v772 = vpop.permute.xlu0 %771
  %773 = vrot.lane.b32.xlu0 %v669, 120
  %v774 = vpop.permute.xlu0 %773
  %775 = vrot.lane.b32.xlu0 %v674, 120
  %v776 = vpop.permute.xlu0 %775
  %777 = vrot.lane.b32.xlu0 %v679, 120
  %v778 = vpop.permute.xlu0 %777
  %779 = vrot.lane.b32.xlu0 %v684, 120
  %v780 = vpop.permute.xlu0 %779
  %781 = vrot.lane.b32.xlu0 %v689, 120
  %v782 = vpop.permute.xlu0 %781
  %783 = vrot.lane.b32.xlu0 %v694, 120
  %v784 = vpop.permute.xlu0 %783
  %785 = vrot.lane.b32.xlu0 %v699, 120
  %v786 = vpop.permute.xlu0 %785
  %787 = vrot.lane.b32.xlu0 %v704, 120
  %v788 = vpop.permute.xlu0 %787
  %789 = vrot.lane.b32.xlu0 %v709, 120
  %v790 = vpop.permute.xlu0 %789
  %791 = vrot.lane.b32.xlu0 %v714, 120
  %v792 = vpop.permute.xlu0 %791
  %793 = vrot.lane.b32.xlu0 %v719, 120
  %v794 = vpop.permute.xlu0 %793
  %795 = vrot.lane.b32.xlu0 %v724, 120
  %v796 = vpop.permute.xlu0 %795
  %797 = vrot.lane.b32.xlu0 %v729, 120
  %v798 = vpop.permute.xlu0 %797
  %799 = vrot.lane.b32.xlu0 %v734, 120
  %v800 = vpop.permute.xlu0 %799
  %817 = vst.msk [vmem:[%s3] sm:$0xff] %vm520, %v770
  %818 = vst.msk [vmem:[%s3 + $0x8] sm:$0xff] %vm520, %v772
  %819 = vst.msk [vmem:[%s3 + $0x10] sm:$0xff] %vm520, %v774
  %820 = vst.msk [vmem:[%s3 + $0x18] sm:$0xff] %vm520, %v776
  %821 = vst.msk [vmem:[%s3 + $0x20] sm:$0xff] %vm520, %v778
  %822 = vst.msk [vmem:[%s3 + $0x28] sm:$0xff] %vm520, %v780
  %823 = vst.msk [vmem:[%s3 + $0x30] sm:$0xff] %vm520, %v782
  %824 = vst.msk [vmem:[%s3 + $0x38] sm:$0xff] %vm520, %v784
  %825 = vst.msk [vmem:[%s3 + $0x40] sm:$0xff] %vm520, %v786
  %826 = vst.msk [vmem:[%s3 + $0x48] sm:$0xff] %vm520, %v788
  %827 = vst.msk [vmem:[%s3 + $0x50] sm:$0xff] %vm520, %v790
  %828 = vst.msk [vmem:[%s3 + $0x58] sm:$0xff] %vm520, %v792
  %829 = vst.msk [vmem:[%s3 + $0x60] sm:$0xff] %vm520, %v794
  %830 = vst.msk [vmem:[%s3 + $0x68] sm:$0xff] %vm520, %v796
  %831 = vst.msk [vmem:[%s3 + $0x70] sm:$0xff] %vm520, %v798
  %832 = vst.msk [vmem:[%s3 + $0x78] sm:$0xff] %vm520, %v800
  %v833 = vld [vmem:[%s4] sm:$0x3]
  %vm834 = vcmask 130048
  %v835 = vsel %vm834, %v659, 0.0
  %v836 = vsel %vm834, %v664, 0.0
  %v837 = vadd.f32 %v835, %v836
  %v838 = vsel %vm834, %v669, 0.0
  %v839 = vadd.f32 %v837, %v838
  %v840 = vsel %vm834, %v674, 0.0
  %v841 = vadd.f32 %v839, %v840
  %v842 = vsel %vm834, %v679, 0.0
  %v843 = vadd.f32 %v841, %v842
  %v844 = vsel %vm834, %v684, 0.0
  %v845 = vadd.f32 %v843, %v844
  %v846 = vsel %vm834, %v689, 0.0
  %v847 = vadd.f32 %v845, %v846
  %v848 = vsel %vm834, %v694, 0.0
  %v849 = vadd.f32 %v847, %v848
  %v850 = vsel %vm834, %v699, 0.0
  %v851 = vadd.f32 %v849, %v850
  %v852 = vsel %vm834, %v704, 0.0
  %v853 = vadd.f32 %v851, %v852
  %v854 = vsel %vm834, %v709, 0.0
  %v855 = vadd.f32 %v853, %v854
  %v856 = vsel %vm834, %v714, 0.0
  %v857 = vadd.f32 %v855, %v856
  %v858 = vsel %vm834, %v719, 0.0
  %v859 = vadd.f32 %v857, %v858
  %v860 = vsel %vm834, %v724, 0.0
  %v861 = vadd.f32 %v859, %v860
  %v862 = vsel %vm834, %v729, 0.0
  %v863 = vadd.f32 %v861, %v862
  %v864 = vsel %vm834, %v734, 0.0
  %v865 = vadd.f32 %v863, %v864
  %v866 = vrot.slane %v865, 4
  %v867 = vadd.f32 %v865, %v866
  %v868 = vrot.slane %v867, 2
  %v869 = vadd.f32 %v867, %v868
  %v870 = vrot.slane %v869, 1
  %v871 = vadd.f32 %v869, %v870
  %v872 = vmul.f32 %v659, %v659
  %v873 = vmul.f32 %v664, %v664
  %v874 = vmul.f32 %v669, %v669
  %v875 = vmul.f32 %v674, %v674
  %v876 = vmul.f32 %v679, %v679
  %v877 = vmul.f32 %v684, %v684
  %v878 = vmul.f32 %v689, %v689
  %v879 = vmul.f32 %v694, %v694
  %v880 = vmul.f32 %v699, %v699
  %v881 = vmul.f32 %v704, %v704
  %v882 = vmul.f32 %v709, %v709
  %v883 = vmul.f32 %v714, %v714
  %v884 = vmul.f32 %v719, %v719
  %v885 = vmul.f32 %v724, %v724
  %v886 = vmul.f32 %v729, %v729
  %v887 = vmul.f32 %v734, %v734
  %v888 = vsel %vm834, %v872, 0.0
  %v889 = vsel %vm834, %v873, 0.0
  %v890 = vadd.f32 %v888, %v889
  %v891 = vsel %vm834, %v874, 0.0
  %v892 = vadd.f32 %v890, %v891
  %v893 = vsel %vm834, %v875, 0.0
  %v894 = vadd.f32 %v892, %v893
  %v895 = vsel %vm834, %v876, 0.0
  %v896 = vadd.f32 %v894, %v895
  %v897 = vsel %vm834, %v877, 0.0
  %v898 = vadd.f32 %v896, %v897
  %v899 = vsel %vm834, %v878, 0.0
  %v900 = vadd.f32 %v898, %v899
  %v901 = vsel %vm834, %v879, 0.0
  %v902 = vadd.f32 %v900, %v901
  %v903 = vsel %vm834, %v880, 0.0
  %v904 = vadd.f32 %v902, %v903
  %v905 = vsel %vm834, %v881, 0.0
  %v906 = vadd.f32 %v904, %v905
  %v907 = vsel %vm834, %v882, 0.0
  %v908 = vadd.f32 %v906, %v907
  %v909 = vsel %vm834, %v883, 0.0
  %v910 = vadd.f32 %v908, %v909
  %v911 = vsel %vm834, %v884, 0.0
  %v912 = vadd.f32 %v910, %v911
  %v913 = vsel %vm834, %v885, 0.0
  %v914 = vadd.f32 %v912, %v913
  %v915 = vsel %vm834, %v886, 0.0
  %v916 = vadd.f32 %v914, %v915
  %v917 = vsel %vm834, %v887, 0.0
  %v918 = vadd.f32 %v916, %v917
  %v919 = vrot.slane %v918, 4
  %v920 = vadd.f32 %v918, %v919
  %v921 = vrot.slane %v920, 2
  %v922 = vadd.f32 %v920, %v921
  %v923 = vrot.slane %v922, 1
  %v924 = vadd.f32 %v922, %v923
  %vm925 = vcmask 1040384
  %v926 = vsel %vm925, %v871, %v924
  %v927 = vadd.f32 %v833, %v926
  %vm928 = vcmask 123904
  %929 = vst.msk [vmem:[%s4] sm:$0x3] %vm928, %v927
  // Predicated region
  $region14: #{residual_block_pallas.3} parent=0 // pred_check
    _
  $region15: #{residual_block_pallas.3} parent=0 // pred_check_branch
    %931 = sbr.rel (0) target = $region17
  $region16: #{residual_block_pallas.3} parent=0 // pred_region
    _
  $region17: #{residual_block_pallas.3} parent=0 // pred_fallthru
    _
  // Predicated region
  $region18: #{residual_block_pallas.3} parent=0 // pred_check
    _
  $region19: #{residual_block_pallas.3} parent=0 // pred_check_branch
    %933 = sbr.rel (0) target = $region21
  $region20: #{residual_block_pallas.3} parent=0 // pred_region
    _
  $region21: #{residual_block_pallas.3} parent=0 // pred_fallthru
    _
  // Predicated region
  $region22: #{residual_block_pallas.3} parent=0 // pred_check
    _
  $region23: #{residual_block_pallas.3} parent=0 // pred_check_branch
    %935 = sbr.rel (0) target = $region25
  $region24: #{residual_block_pallas.3} parent=0 // pred_region
    _
  $region25: #{residual_block_pallas.3} parent=0 // pred_fallthru
    _
  // Predicated region
  $region26: #{residual_block_pallas.3} parent=0 // pred_check
    _
  $region27: #{residual_block_pallas.3} parent=0 // pred_check_branch
    %937 = sbr.rel (0) target = $region29
  $region28: #{residual_block_pallas.3} parent=0 // pred_region
    _
  $region29: #{residual_block_pallas.3} parent=0 // pred_fallthru
    _
  // Predicated region
  $region30: #{residual_block_pallas.3} parent=0 // pred_check
    _
  $region31: #{residual_block_pallas.3} parent=0 // pred_check_branch
    %939 = sbr.rel (0) target = $region33
  $region32: #{residual_block_pallas.3} parent=0 // pred_region
    _
  $region33: #{residual_block_pallas.3} parent=0 // pred_fallthru
    _
  // Predicated region
  $region34: #{residual_block_pallas.3} parent=0 // pred_check
    _
  $region35: #{residual_block_pallas.3} parent=0 // pred_check_branch
    %941 = sbr.rel (0) target = $region37
  $region36: #{residual_block_pallas.3} parent=0 // pred_region
    _
  $region37: #{residual_block_pallas.3} parent=0 // pred_fallthru
    _

// kernel: residual_block_pallas.4
$region0: #{residual_block_pallas.4}
  #allocation0 [shape = 'u32[]', space=smem, size = 0x4, offset = 0x4, fixed_abs, tag = 'smem constant byte address 0x4 - core index']
  #allocation1 [shape = 'u32[144,128]{1,0:T(1,128)}', space=vmem, size = 0x12000, scoped, tag = 'internal scratch']
  %s0 = inlined_call_operand.vmem [shape: f32[128,8], index: 0, kind: input, shape index: {}]
  %s1 = inlined_call_operand.vmem [shape: f32[1,8], index: 1, kind: input, shape index: {}]
  %s2 = inlined_call_operand.vmem [shape: f32[1,8], index: 2, kind: input, shape index: {}]
  %s3 = inlined_call_operand.vmem [shape: f32[24,8], index: 3, kind: input, shape index: {}]
  %s4 = inlined_call_operand.vmem [shape: f32[128,8], index: 4, kind: output, shape index: {0}]
  %s5 = inlined_call_operand.vmem [shape: f32[2,8], index: 5, kind: output, shape index: {1}]
  %6 = xla_tuple %s4, %s5
  %s7 = sld [smem:[#allocation0]]
  $region38: #{residual_block_pallas.4} parent=0
    _
  %s9 = ssub.s32 1, %s7
  %s10 = scalar_select 0, %s9, %s7
  // Predicated region
  $region2: #{residual_block_pallas.4} parent=0 // pred_check
    _
  $region3: #{residual_block_pallas.4} parent=0 // pred_check_branch
    %12 = sbr.rel (0) target = $region5
  $region4: #{residual_block_pallas.4} parent=0 // pred_region
    _
  $region5: #{residual_block_pallas.4} parent=0 // pred_fallthru
    _
  // Predicated region
  $region6: #{residual_block_pallas.4} parent=0 // pred_check
    _
  $region7: #{residual_block_pallas.4} parent=0 // pred_check_branch
    %14 = sbr.rel (0) target = $region9
  $region8: #{residual_block_pallas.4} parent=0 // pred_region
    _
  $region9: #{residual_block_pallas.4} parent=0 // pred_fallthru
    _
  // Predicated region
  $region10: #{residual_block_pallas.4} parent=0 // pred_check
    _
  $region11: #{residual_block_pallas.4} parent=0 // pred_check_branch
    %16 = sbr.rel (0) target = $region13
  $region12: #{residual_block_pallas.4} parent=0 // pred_region
    _
  $region13: #{residual_block_pallas.4} parent=0 // pred_fallthru
    _
  // Predicated region
  $region14: #{residual_block_pallas.4} parent=0 // pred_check
    _
  $region15: #{residual_block_pallas.4} parent=0 // pred_check_branch
    %18 = sbr.rel (0) target = $region17
  $region16: #{residual_block_pallas.4} parent=0 // pred_region
    _
  $region17: #{residual_block_pallas.4} parent=0 // pred_fallthru
    _
  %p19 = scmp.eq.s32.totalorder 0, 0
  // Predicated region
  $region18: #{residual_block_pallas.4} parent=0 // pred_check
    %p20 = pneg %p19
  $region19: #{residual_block_pallas.4} parent=0 // pred_check_branch
    %22 = sbr.rel (%p20) target = $region21
  $region20: #{residual_block_pallas.4} parent=0 // pred_region
    %vm23 = vcmask 58368
    %24 = vst.msk [vmem:[%s5] sm:$0x3] %vm23, 0.0
  $region21: #{residual_block_pallas.4} parent=0 // pred_fallthru
    _
  %v25 = vld [vmem:[%s0] sm:$0xff]
  %v26 = vld [vmem:[%s0 + $0x8] sm:$0xff]
  %v27 = vld [vmem:[%s0 + $0x10] sm:$0xff]
  %v28 = vld [vmem:[%s0 + $0x18] sm:$0xff]
  %v29 = vld [vmem:[%s0 + $0x20] sm:$0xff]
  %v30 = vld [vmem:[%s0 + $0x28] sm:$0xff]
  %v31 = vld [vmem:[%s0 + $0x30] sm:$0xff]
  %v32 = vld [vmem:[%s0 + $0x38] sm:$0xff]
  %v33 = vld [vmem:[%s0 + $0x40] sm:$0xff]
  %v34 = vld [vmem:[%s0 + $0x48] sm:$0xff]
  %v35 = vld [vmem:[%s0 + $0x50] sm:$0xff]
  %v36 = vld [vmem:[%s0 + $0x58] sm:$0xff]
  %v37 = vld [vmem:[%s0 + $0x60] sm:$0xff]
  %v38 = vld [vmem:[%s0 + $0x68] sm:$0xff]
  %v39 = vld [vmem:[%s0 + $0x70] sm:$0xff]
  %v40 = vld [vmem:[%s0 + $0x78] sm:$0xff]
  %v41 = vld [vmem:[%s1] sm:$0x1]
  %v43 = vlaneseq
  %v44 = vshrl.u32 %v43, 7
  %v45 = vsub.s32 0, %v44
  %v46 = vrot.slane %v41, %v45
  %v48 = vmul.f32 %v25, %v46
  %v49 = vmul.f32 %v26, %v46
  %v50 = vmul.f32 %v27, %v46
  %v51 = vmul.f32 %v28, %v46
  %v52 = vmul.f32 %v29, %v46
  %v53 = vmul.f32 %v30, %v46
  %v54 = vmul.f32 %v31, %v46
  %v55 = vmul.f32 %v32, %v46
  %v56 = vmul.f32 %v33, %v46
  %v57 = vmul.f32 %v34, %v46
  %v58 = vmul.f32 %v35, %v46
  %v59 = vmul.f32 %v36, %v46
  %v60 = vmul.f32 %v37, %v46
  %v61 = vmul.f32 %v38, %v46
  %v62 = vmul.f32 %v39, %v46
  %v63 = vmul.f32 %v40, %v46
  %v64 = vld [vmem:[%s2] sm:$0x1]
  %v66 = vlaneseq
  %v67 = vshrl.u32 %v66, 7
  %v68 = vsub.s32 0, %v67
  %v69 = vrot.slane %v64, %v68
  %v71 = vadd.f32 %v48, %v69
  %v72 = vadd.f32 %v49, %v69
  %v73 = vadd.f32 %v50, %v69
  %v74 = vadd.f32 %v51, %v69
  %v75 = vadd.f32 %v52, %v69
  %v76 = vadd.f32 %v53, %v69
  %v77 = vadd.f32 %v54, %v69
  %v78 = vadd.f32 %v55, %v69
  %v79 = vadd.f32 %v56, %v69
  %v80 = vadd.f32 %v57, %v69
  %v81 = vadd.f32 %v58, %v69
  %v82 = vadd.f32 %v59, %v69
  %v83 = vadd.f32 %v60, %v69
  %v84 = vadd.f32 %v61, %v69
  %v85 = vadd.f32 %v62, %v69
  %v86 = vadd.f32 %v63, %v69
  %v87 = vlaneseq
  %v88 = vshrl.u32 %v87, 7
  %v89 = vadd.s32 %v88, 8
  %v90 = vadd.s32 %v88, 16
  %v91 = vadd.s32 %v88, 24
  %v92 = vadd.s32 %v88, 32
  %v93 = vadd.s32 %v88, 40
  %v94 = vadd.s32 %v88, 48
  %v95 = vadd.s32 %v88, 56
  %v96 = vadd.s32 %v88, 64
  %v97 = vadd.s32 %v88, 72
  %v98 = vadd.s32 %v88, 80
  %v99 = vadd.s32 %v88, 88
  %v100 = vadd.s32 %v88, 96
  %v101 = vadd.s32 %v88, 104
  %v102 = vadd.s32 %v88, 112
  %v103 = vadd.s32 %v88, 120
  %vm104 = vcmp.lt.s32.totalorder %v88, 0
  %v105 = vsub.s32 0, %v88
  %v106 = vsel %vm104, %v105, %v88
  %v107 = vshrl.u32 %v106, 4
  %v108 = vand.u32 %v106, 15
  %v109 = vsub.s32 0, %v108
  %v110 = vsel %vm104, %v109, %v108
  %vm111 = vcmp.lt.s32.totalorder %v89, 0
  %v112 = vsub.s32 0, %v89
  %v113 = vsel %vm111, %v112, %v89
  %v114 = vshrl.u32 %v113, 4
  %v115 = vand.u32 %v113, 15
  %v116 = vsub.s32 0, %v115
  %v117 = vsel %vm111, %v116, %v115
  %vm118 = vcmp.lt.s32.totalorder %v90, 0
  %v119 = vsub.s32 0, %v90
  %v120 = vsel %vm118, %v119, %v90
  %v121 = vshrl.u32 %v120, 4
  %v122 = vand.u32 %v120, 15
  %v123 = vsub.s32 0, %v122
  %v124 = vsel %vm118, %v123, %v122
  %vm125 = vcmp.lt.s32.totalorder %v91, 0
  %v126 = vsub.s32 0, %v91
  %v127 = vsel %vm125, %v126, %v91
  %v128 = vshrl.u32 %v127, 4
  %v129 = vand.u32 %v127, 15
  %v130 = vsub.s32 0, %v129
  %v131 = vsel %vm125, %v130, %v129
  %vm132 = vcmp.lt.s32.totalorder %v92, 0
  %v133 = vsub.s32 0, %v92
  %v134 = vsel %vm132, %v133, %v92
  %v135 = vshrl.u32 %v134, 4
  %v136 = vand.u32 %v134, 15
  %v137 = vsub.s32 0, %v136
  %v138 = vsel %vm132, %v137, %v136
  %vm139 = vcmp.lt.s32.totalorder %v93, 0
  %v140 = vsub.s32 0, %v93
  %v141 = vsel %vm139, %v140, %v93
  %v142 = vshrl.u32 %v141, 4
  %v143 = vand.u32 %v141, 15
  %v144 = vsub.s32 0, %v143
  %v145 = vsel %vm139, %v144, %v143
  %vm146 = vcmp.lt.s32.totalorder %v94, 0
  %v147 = vsub.s32 0, %v94
  %v148 = vsel %vm146, %v147, %v94
  %v149 = vshrl.u32 %v148, 4
  %v150 = vand.u32 %v148, 15
  %v151 = vsub.s32 0, %v150
  %v152 = vsel %vm146, %v151, %v150
  %vm153 = vcmp.lt.s32.totalorder %v95, 0
  %v154 = vsub.s32 0, %v95
  %v155 = vsel %vm153, %v154, %v95
  %v156 = vshrl.u32 %v155, 4
  %v157 = vand.u32 %v155, 15
  %v158 = vsub.s32 0, %v157
  %v159 = vsel %vm153, %v158, %v157
  %vm160 = vcmp.lt.s32.totalorder %v96, 0
  %v161 = vsub.s32 0, %v96
  %v162 = vsel %vm160, %v161, %v96
  %v163 = vshrl.u32 %v162, 4
  %v164 = vand.u32 %v162, 15
  %v165 = vsub.s32 0, %v164
  %v166 = vsel %vm160, %v165, %v164
  %vm167 = vcmp.lt.s32.totalorder %v97, 0
  %v168 = vsub.s32 0, %v97
  %v169 = vsel %vm167, %v168, %v97
  %v170 = vshrl.u32 %v169, 4
  %v171 = vand.u32 %v169, 15
  %v172 = vsub.s32 0, %v171
  %v173 = vsel %vm167, %v172, %v171
  %vm174 = vcmp.lt.s32.totalorder %v98, 0
  %v175 = vsub.s32 0, %v98
  %v176 = vsel %vm174, %v175, %v98
  %v177 = vshrl.u32 %v176, 4
  %v178 = vand.u32 %v176, 15
  %v179 = vsub.s32 0, %v178
  %v180 = vsel %vm174, %v179, %v178
  %vm181 = vcmp.lt.s32.totalorder %v99, 0
  %v182 = vsub.s32 0, %v99
  %v183 = vsel %vm181, %v182, %v99
  %v184 = vshrl.u32 %v183, 4
  %v185 = vand.u32 %v183, 15
  %v186 = vsub.s32 0, %v185
  %v187 = vsel %vm181, %v186, %v185
  %vm188 = vcmp.lt.s32.totalorder %v100, 0
  %v189 = vsub.s32 0, %v100
  %v190 = vsel %vm188, %v189, %v100
  %v191 = vshrl.u32 %v190, 4
  %v192 = vand.u32 %v190, 15
  %v193 = vsub.s32 0, %v192
  %v194 = vsel %vm188, %v193, %v192
  %vm195 = vcmp.lt.s32.totalorder %v101, 0
  %v196 = vsub.s32 0, %v101
  %v197 = vsel %vm195, %v196, %v101
  %v198 = vshrl.u32 %v197, 4
  %v199 = vand.u32 %v197, 15
  %v200 = vsub.s32 0, %v199
  %v201 = vsel %vm195, %v200, %v199
  %vm202 = vcmp.lt.s32.totalorder %v102, 0
  %v203 = vsub.s32 0, %v102
  %v204 = vsel %vm202, %v203, %v102
  %v205 = vshrl.u32 %v204, 4
  %v206 = vand.u32 %v204, 15
  %v207 = vsub.s32 0, %v206
  %v208 = vsel %vm202, %v207, %v206
  %vm209 = vcmp.lt.s32.totalorder %v103, 0
  %v210 = vsub.s32 0, %v103
  %v211 = vsel %vm209, %v210, %v103
  %v212 = vshrl.u32 %v211, 4
  %v213 = vand.u32 %v211, 15
  %v214 = vsub.s32 0, %v213
  %v215 = vsel %vm209, %v214, %v213
  %vm216 = vcmp.ne.s32.totalorder %v110, 0
  %vm217 = vcmp.ne.s32.totalorder %v117, 0
  %vm218 = vcmp.ne.s32.totalorder %v124, 0
  %vm219 = vcmp.ne.s32.totalorder %v131, 0
  %vm220 = vcmp.ne.s32.totalorder %v138, 0
  %vm221 = vcmp.ne.s32.totalorder %v145, 0
  %vm222 = vcmp.ne.s32.totalorder %v152, 0
  %vm223 = vcmp.ne.s32.totalorder %v159, 0
  %vm224 = vcmp.ne.s32.totalorder %v166, 0
  %vm225 = vcmp.ne.s32.totalorder %v173, 0
  %vm226 = vcmp.ne.s32.totalorder %v180, 0
  %vm227 = vcmp.ne.s32.totalorder %v187, 0
  %vm228 = vcmp.ne.s32.totalorder %v194, 0
  %vm229 = vcmp.ne.s32.totalorder %v201, 0
  %vm230 = vcmp.ne.s32.totalorder %v208, 0
  %vm231 = vcmp.ne.s32.totalorder %v215, 0
  %vm232 = vcmp.lt.s32.totalorder %v110, 0
  %vm233 = vcmp.lt.s32.totalorder %v117, 0
  %vm234 = vcmp.lt.s32.totalorder %v124, 0
  %vm235 = vcmp.lt.s32.totalorder %v131, 0
  %vm236 = vcmp.lt.s32.totalorder %v138, 0
  %vm237 = vcmp.lt.s32.totalorder %v145, 0
  %vm238 = vcmp.lt.s32.totalorder %v152, 0
  %vm239 = vcmp.lt.s32.totalorder %v159, 0
  %vm240 = vcmp.lt.s32.totalorder %v166, 0
  %vm241 = vcmp.lt.s32.totalorder %v173, 0
  %vm242 = vcmp.lt.s32.totalorder %v180, 0
  %vm243 = vcmp.lt.s32.totalorder %v187, 0
  %vm244 = vcmp.lt.s32.totalorder %v194, 0
  %vm245 = vcmp.lt.s32.totalorder %v201, 0
  %vm246 = vcmp.lt.s32.totalorder %v208, 0
  %vm247 = vcmp.lt.s32.totalorder %v215, 0
  %vm248 = vmand %vm232, %vm216
  %vm249 = vmand %vm233, %vm217
  %vm250 = vmand %vm234, %vm218
  %vm251 = vmand %vm235, %vm219
  %vm252 = vmand %vm236, %vm220
  %vm253 = vmand %vm237, %vm221
  %vm254 = vmand %vm238, %vm222
  %vm255 = vmand %vm239, %vm223
  %vm256 = vmand %vm240, %vm224
  %vm257 = vmand %vm241, %vm225
  %vm258 = vmand %vm242, %vm226
  %vm259 = vmand %vm243, %vm227
  %vm260 = vmand %vm244, %vm228
  %vm261 = vmand %vm245, %vm229
  %vm262 = vmand %vm246, %vm230
  %vm263 = vmand %vm247, %vm231
  %v264 = vadd.s32 %v110, 16
  %v265 = vadd.s32 %v117, 16
  %v266 = vadd.s32 %v124, 16
  %v267 = vadd.s32 %v131, 16
  %v268 = vadd.s32 %v138, 16
  %v269 = vadd.s32 %v145, 16
  %v270 = vadd.s32 %v152, 16
  %v271 = vadd.s32 %v159, 16
  %v272 = vadd.s32 %v166, 16
  %v273 = vadd.s32 %v173, 16
  %v274 = vadd.s32 %v180, 16
  %v275 = vadd.s32 %v187, 16
  %v276 = vadd.s32 %v194, 16
  %v277 = vadd.s32 %v201, 16
  %v278 = vadd.s32 %v208, 16
  %v279 = vadd.s32 %v215, 16
  %v280 = vsel %vm248, %v264, %v110
  %v281 = vsel %vm249, %v265, %v117
  %v282 = vsel %vm250, %v266, %v124
  %v283 = vsel %vm251, %v267, %v131
  %v284 = vsel %vm252, %v268, %v138
  %v285 = vsel %vm253, %v269, %v145
  %v286 = vsel %vm254, %v270, %v152
  %v287 = vsel %vm255, %v271, %v159
  %v288 = vsel %vm256, %v272, %v166
  %v289 = vsel %vm257, %v273, %v173
  %v290 = vsel %vm258, %v274, %v180
  %v291 = vsel %vm259, %v275, %v187
  %v292 = vsel %vm260, %v276, %v194
  %v293 = vsel %vm261, %v277, %v201
  %v294 = vsel %vm262, %v278, %v208
  %v295 = vsel %vm263, %v279, %v215
  %vm296 = vcmp.eq.s32.totalorder %v280, 0
  %vm297 = vcmp.eq.s32.totalorder %v281, 0
  %vm298 = vcmp.eq.s32.totalorder %v282, 0
  %vm299 = vcmp.eq.s32.totalorder %v283, 0
  %vm300 = vcmp.eq.s32.totalorder %v284, 0
  %vm301 = vcmp.eq.s32.totalorder %v285, 0
  %vm302 = vcmp.eq.s32.totalorder %v286, 0
  %vm303 = vcmp.eq.s32.totalorder %v287, 0
  %vm304 = vcmp.eq.s32.totalorder %v288, 0
  %vm305 = vcmp.eq.s32.totalorder %v289, 0
  %vm306 = vcmp.eq.s32.totalorder %v290, 0
  %vm307 = vcmp.eq.s32.totalorder %v291, 0
  %vm308 = vcmp.eq.s32.totalorder %v292, 0
  %vm309 = vcmp.eq.s32.totalorder %v293, 0
  %vm310 = vcmp.eq.s32.totalorder %v294, 0
  %vm311 = vcmp.eq.s32.totalorder %v295, 0
  %v312 = vrot.slane %v71, 7
  %v313 = vrot.slane %v72, 7
  %v314 = vrot.slane %v73, 7
  %v315 = vrot.slane %v74, 7
  %v316 = vrot.slane %v75, 7
  %v317 = vrot.slane %v76, 7
  %v318 = vrot.slane %v77, 7
  %v319 = vrot.slane %v78, 7
  %v320 = vrot.slane %v79, 7
  %v321 = vrot.slane %v80, 7
  %v322 = vrot.slane %v81, 7
  %v323 = vrot.slane %v82, 7
  %v324 = vrot.slane %v83, 7
  %v325 = vrot.slane %v84, 7
  %v326 = vrot.slane %v85, 7
  %v327 = vrot.slane %v86, 7
  %vm328 = vcmp.lt.s32.totalorder %v88, 1
  %v329 = vsel %vm328, %v326, %v327
  %v330 = vsel %vm328, %v325, %v326
  %v331 = vsel %vm328, %v324, %v325
  %v332 = vsel %vm328, %v323, %v324
  %v333 = vsel %vm328, %v322, %v323
  %v334 = vsel %vm328, %v321, %v322
  %v335 = vsel %vm328, %v320, %v321
  %v336 = vsel %vm328, %v319, %v320
  %v337 = vsel %vm328, %v318, %v319
  %v338 = vsel %vm328, %v317, %v318
  %v339 = vsel %vm328, %v316, %v317
  %v340 = vsel %vm328, %v315, %v316
  %v341 = vsel %vm328, %v314, %v315
  %v342 = vsel %vm328, %v313, %v314
  %v343 = vsel %vm328, %v312, %v313
  %v344 = vsel %vm328, %v327, %v312
  %v345 = vsel %vm296, 0.0, %v344
  %v346 = vsel %vm297, 0.0, %v343
  %v347 = vsel %vm298, 0.0, %v342
  %v348 = vsel %vm299, 0.0, %v341
  %v349 = vsel %vm300, 0.0, %v340
  %v350 = vsel %vm301, 0.0, %v339
  %v351 = vsel %vm302, 0.0, %v338
  %v352 = vsel %vm303, 0.0, %v337
  %v353 = vsel %vm304, 0.0, %v336
  %v354 = vsel %vm305, 0.0, %v335
  %v355 = vsel %vm306, 0.0, %v334
  %v356 = vsel %vm307, 0.0, %v333
  %v357 = vsel %vm308, 0.0, %v332
  %v358 = vsel %vm309, 0.0, %v331
  %v359 = vsel %vm310, 0.0, %v330
  %v360 = vsel %vm311, 0.0, %v329
  %vm361 = vcmp.eq.s32.totalorder %v280, 15
  %vm362 = vcmp.eq.s32.totalorder %v281, 15
  %vm363 = vcmp.eq.s32.totalorder %v282, 15
  %vm364 = vcmp.eq.s32.totalorder %v283, 15
  %vm365 = vcmp.eq.s32.totalorder %v284, 15
  %vm366 = vcmp.eq.s32.totalorder %v285, 15
  %vm367 = vcmp.eq.s32.totalorder %v286, 15
  %vm368 = vcmp.eq.s32.totalorder %v287, 15
  %vm369 = vcmp.eq.s32.totalorder %v288, 15
  %vm370 = vcmp.eq.s32.totalorder %v289, 15
  %vm371 = vcmp.eq.s32.totalorder %v290, 15
  %vm372 = vcmp.eq.s32.totalorder %v291, 15
  %vm373 = vcmp.eq.s32.totalorder %v292, 15
  %vm374 = vcmp.eq.s32.totalorder %v293, 15
  %vm375 = vcmp.eq.s32.totalorder %v294, 15
  %vm376 = vcmp.eq.s32.totalorder %v295, 15
  %v377 = vrot.slane %v71, 1
  %v378 = vrot.slane %v72, 1
  %v379 = vrot.slane %v73, 1
  %v380 = vrot.slane %v74, 1
  %v381 = vrot.slane %v75, 1
  %v382 = vrot.slane %v76, 1
  %v383 = vrot.slane %v77, 1
  %v384 = vrot.slane %v78, 1
  %v385 = vrot.slane %v79, 1
  %v386 = vrot.slane %v80, 1
  %v387 = vrot.slane %v81, 1
  %v388 = vrot.slane %v82, 1
  %v389 = vrot.slane %v83, 1
  %v390 = vrot.slane %v84, 1
  %v391 = vrot.slane %v85, 1
  %v392 = vrot.slane %v86, 1
  %vm393 = vcmp.lt.s32.totalorder %v88, 7
  %v394 = vsel %vm393, %v391, %v392
  %v395 = vsel %vm393, %v390, %v391
  %v396 = vsel %vm393, %v389, %v390
  %v397 = vsel %vm393, %v388, %v389
  %v398 = vsel %vm393, %v387, %v388
  %v399 = vsel %vm393, %v386, %v387
  %v400 = vsel %vm393, %v385, %v386
  %v401 = vsel %vm393, %v384, %v385
  %v402 = vsel %vm393, %v383, %v384
  %v403 = vsel %vm393, %v382, %v383
  %v404 = vsel %vm393, %v381, %v382
  %v405 = vsel %vm393, %v380, %v381
  %v406 = vsel %vm393, %v379, %v380
  %v407 = vsel %vm393, %v378, %v379
  %v408 = vsel %vm393, %v377, %v378
  %v409 = vsel %vm393, %v392, %v377
  %v410 = vsel %vm361, 0.0, %v408
  %v411 = vsel %vm362, 0.0, %v407
  %v412 = vsel %vm363, 0.0, %v406
  %v413 = vsel %vm364, 0.0, %v405
  %v414 = vsel %vm365, 0.0, %v404
  %v415 = vsel %vm366, 0.0, %v403
  %v416 = vsel %vm367, 0.0, %v402
  %v417 = vsel %vm368, 0.0, %v401
  %v418 = vsel %vm369, 0.0, %v400
  %v419 = vsel %vm370, 0.0, %v399
  %v420 = vsel %vm371, 0.0, %v398
  %v421 = vsel %vm372, 0.0, %v397
  %v422 = vsel %vm373, 0.0, %v396
  %v423 = vsel %vm374, 0.0, %v395
  %v424 = vsel %vm375, 0.0, %v394
  %v425 = vsel %vm376, 0.0, %v409
  %442 = vrot.lane.b32.xlu0 %v71, 8
  %v443 = vpop.permute.xlu0 %442
  %444 = vrot.lane.b32.xlu0 %v72, 8
  %v445 = vpop.permute.xlu0 %444
  %446 = vrot.lane.b32.xlu0 %v73, 8
  %v447 = vpop.permute.xlu0 %446
  %448 = vrot.lane.b32.xlu0 %v74, 8
  %v449 = vpop.permute.xlu0 %448
  %450 = vrot.lane.b32.xlu0 %v75, 8
  %v451 = vpop.permute.xlu0 %450
  %452 = vrot.lane.b32.xlu0 %v76, 8
  %v453 = vpop.permute.xlu0 %452
  %454 = vrot.lane.b32.xlu0 %v77, 8
  %v455 = vpop.permute.xlu0 %454
  %456 = vrot.lane.b32.xlu0 %v78, 8
  %v457 = vpop.permute.xlu0 %456
  %458 = vrot.lane.b32.xlu0 %v79, 8
  %v459 = vpop.permute.xlu0 %458
  %460 = vrot.lane.b32.xlu0 %v80, 8
  %v461 = vpop.permute.xlu0 %460
  %462 = vrot.lane.b32.xlu0 %v81, 8
  %v463 = vpop.permute.xlu0 %462
  %464 = vrot.lane.b32.xlu0 %v82, 8
  %v465 = vpop.permute.xlu0 %464
  %466 = vrot.lane.b32.xlu0 %v83, 8
  %v467 = vpop.permute.xlu0 %466
  %468 = vrot.lane.b32.xlu0 %v84, 8
  %v469 = vpop.permute.xlu0 %468
  %470 = vrot.lane.b32.xlu0 %v85, 8
  %v471 = vpop.permute.xlu0 %470
  %472 = vrot.lane.b32.xlu0 %v86, 8
  %v473 = vpop.permute.xlu0 %472
  %506 = vrot.lane.b32.xlu0 %v410, 16
  %v507 = vpop.permute.xlu0 %506
  %508 = vrot.lane.b32.xlu0 %v411, 16
  %v509 = vpop.permute.xlu0 %508
  %510 = vrot.lane.b32.xlu0 %v412, 16
  %v511 = vpop.permute.xlu0 %510
  %512 = vrot.lane.b32.xlu0 %v413, 16
  %v513 = vpop.permute.xlu0 %512
  %514 = vrot.lane.b32.xlu0 %v414, 16
  %v515 = vpop.permute.xlu0 %514
  %516 = vrot.lane.b32.xlu0 %v415, 16
  %v517 = vpop.permute.xlu0 %516
  %518 = vrot.lane.b32.xlu0 %v416, 16
  %v519 = vpop.permute.xlu0 %518
  %520 = vrot.lane.b32.xlu0 %v417, 16
  %v521 = vpop.permute.xlu0 %520
  %522 = vrot.lane.b32.xlu0 %v418, 16
  %v523 = vpop.permute.xlu0 %522
  %524 = vrot.lane.b32.xlu0 %v419, 16
  %v525 = vpop.permute.xlu0 %524
  %526 = vrot.lane.b32.xlu0 %v420, 16
  %v527 = vpop.permute.xlu0 %526
  %528 = vrot.lane.b32.xlu0 %v421, 16
  %v529 = vpop.permute.xlu0 %528
  %530 = vrot.lane.b32.xlu0 %v422, 16
  %v531 = vpop.permute.xlu0 %530
  %532 = vrot.lane.b32.xlu0 %v423, 16
  %v533 = vpop.permute.xlu0 %532
  %534 = vrot.lane.b32.xlu0 %v424, 16
  %v535 = vpop.permute.xlu0 %534
  %536 = vrot.lane.b32.xlu0 %v425, 16
  %v537 = vpop.permute.xlu0 %536
  %vm554 = vcmask 64512
  %v555 = vsel %vm554, %v345, %v443
  %v556 = vsel %vm554, %v346, %v445
  %v557 = vsel %vm554, %v347, %v447
  %v558 = vsel %vm554, %v348, %v449
  %v559 = vsel %vm554, %v349, %v451
  %v560 = vsel %vm554, %v350, %v453
  %v561 = vsel %vm554, %v351, %v455
  %v562 = vsel %vm554, %v352, %v457
  %v563 = vsel %vm554, %v353, %v459
  %v564 = vsel %vm554, %v354, %v461
  %v565 = vsel %vm554, %v355, %v463
  %v566 = vsel %vm554, %v356, %v465
  %v567 = vsel %vm554, %v357, %v467
  %v568 = vsel %vm554, %v358, %v469
  %v569 = vsel %vm554, %v359, %v471
  %v570 = vsel %vm554, %v360, %v473
  %vm571 = vcmask 130048
  %v572 = vsel %vm571, %v555, %v507
  %v573 = vsel %vm571, %v556, %v509
  %v574 = vsel %vm571, %v557, %v511
  %v575 = vsel %vm571, %v558, %v513
  %v576 = vsel %vm571, %v559, %v515
  %v577 = vsel %vm571, %v560, %v517
  %v578 = vsel %vm571, %v561, %v519
  %v579 = vsel %vm571, %v562, %v521
  %v580 = vsel %vm571, %v563, %v523
  %v581 = vsel %vm571, %v564, %v525
  %v582 = vsel %vm571, %v565, %v527
  %v583 = vsel %vm571, %v566, %v529
  %v584 = vsel %vm571, %v567, %v531
  %v585 = vsel %vm571, %v568, %v533
  %v586 = vsel %vm571, %v569, %v535
  %v587 = vsel %vm571, %v570, %v537
  %v588 = vld [vmem:[%s3] sm:$0xff]
  %v589 = vld [vmem:[%s3 + $0x8] sm:$0xff]
  %v590 = vld [vmem:[%s3 + $0x10] sm:$0xff]
  %vm591 = vcmask 195584
  %v593 = vsel %vm591, %v572, 0
  %v596 = vsel %vm591, %v573, 0
  %v599 = vsel %vm591, %v574, 0
  %v602 = vsel %vm591, %v575, 0
  %v605 = vsel %vm591, %v576, 0
  %v608 = vsel %vm591, %v577, 0
  %v611 = vsel %vm591, %v578, 0
  %v614 = vsel %vm591, %v579, 0
  %v617 = vsel %vm591, %v580, 0
  %v620 = vsel %vm591, %v581, 0
  %v623 = vsel %vm591, %v582, 0
  %v626 = vsel %vm591, %v583, 0
  %v629 = vsel %vm591, %v584, 0
  %v632 = vsel %vm591, %v585, 0
  %v635 = vsel %vm591, %v586, 0
  %v638 = vsel %vm591, %v587, 0
  %640 = vmatprep.subr.mxu0 0.0
  %641 = vmatpush1.msra.mxu0 0.0
  %642 = vmatprep.subr.mxu0 0.0
  %643 = vmatpush1.msra.mxu0 0.0
  %644 = vmatprep.subr.mxu0 0.0
  %645 = vmatpush1.msra.mxu0 0.0
  %646 = vmatprep.subr.mxu0 0.0
  %647 = vmatpush1.msra.mxu0 0.0
  %648 = vmatprep.subr.mxu0 0.0
  %649 = vmatpush1.msra.mxu0 0.0
  %650 = vmatprep.subr.mxu0 0.0
  %651 = vmatpush1.msra.mxu0 0.0
  %652 = vmatprep.subr.mxu0 0.0
  %653 = vmatpush1.msra.mxu0 0.0
  %654 = vmatprep.subr.mxu0 0.0
  %655 = vmatpush1.msra.mxu0 0.0
  %656 = vmatprep.subr.mxu0 0.0
  %657 = vmatpush1.msra.mxu0 0.0
  %658 = vmatprep.subr.mxu0 0.0
  %659 = vmatpush1.msra.mxu0 0.0
  %660 = vmatprep.subr.mxu0 0.0
  %661 = vmatpush1.msra.mxu0 0.0
  %662 = vmatprep.subr.mxu0 0.0
  %663 = vmatpush1.msra.mxu0 0.0
  %664 = vmatprep.subr.mxu0 0.0
  %665 = vmatpush1.msra.mxu0 0.0
  %666 = vmatprep.subr.mxu0 0.0
  %667 = vmatpush1.msra.mxu0 %v590
  %668 = vmatprep.subr.mxu0 0.0
  %669 = vmatpush1.msra.mxu0 %v589
  %670 = vmatprep.subr.mxu0 0.0
  %671 = vmatpush1.msra.mxu0 %v588
  %672 = vmatprep.subr.mxu0 0.0
  %673 = vmatpush2.msra.mxu0 0.0
  %674 = vmatprep.subr.mxu0 0.0
  %675 = vmatpush2.msra.mxu0 0.0
  %676 = vmatprep.subr.mxu0 0.0
  %677 = vmatpush2.msra.mxu0 0.0
  %678 = vmatprep.subr.mxu0 0.0
  %679 = vmatpush2.msra.mxu0 0.0
  %680 = vmatprep.subr.mxu0 0.0
  %681 = vmatpush2.msra.mxu0 0.0
  %682 = vmatprep.subr.mxu0 0.0
  %683 = vmatpush2.msra.mxu0 0.0
  %684 = vmatprep.subr.mxu0 0.0
  %685 = vmatpush2.msra.mxu0 0.0
  %686 = vmatprep.subr.mxu0 0.0
  %687 = vmatpush2.msra.mxu0 0.0
  %688 = vmatprep.subr.mxu0 0.0
  %689 = vmatpush2.msra.mxu0 0.0
  %690 = vmatprep.subr.mxu0 0.0
  %691 = vmatpush2.msra.mxu0 0.0
  %692 = vmatprep.subr.mxu0 0.0
  %693 = vmatpush2.msra.mxu0 0.0
  %694 = vmatprep.subr.mxu0 0.0
  %695 = vmatpush2.msra.mxu0 0.0
  %696 = vmatprep.subr.mxu0 0.0
  %697 = vmatpush2.msra.mxu0 0.0
  %698 = vmatprep.subr.mxu0 0.0
  %699 = vmatpush2.msra.mxu0 0.0
  %700 = vmatprep.subr.mxu0 0.0
  %701 = vmatpush2.msra.mxu0 0.0
  %702 = vmatprep.subr.mxu0 0.0
  %703 = vmatpush2.msra.mxu0 0.0
  %704 = vmatprep.mubr.f32.mxu0 0.0
  %705 = vmatmul.mubr.f32.gmra.mxu0 %v593
  %v706 = vpop.f32.mrf.mxu0
  %v707 = vadd.f32 0.0, %v706
  %v708 = vpop.f32.mrf.mxu0
  %709 = vmatprep.mubr.f32.mxu0 0.0
  %710 = vmatmul.mubr.f32.gmra.mxu0 %v596
  %v711 = vpop.f32.mrf.mxu0
  %v712 = vadd.f32 0.0, %v711
  %v713 = vpop.f32.mrf.mxu0
  %714 = vmatprep.mubr.f32.mxu0 0.0
  %715 = vmatmul.mubr.f32.gmra.mxu0 %v599
  %v716 = vpop.f32.mrf.mxu0
  %v717 = vadd.f32 0.0, %v716
  %v718 = vpop.f32.mrf.mxu0
  %719 = vmatprep.mubr.f32.mxu0 0.0
  %720 = vmatmul.mubr.f32.gmra.mxu0 %v602
  %v721 = vpop.f32.mrf.mxu0
  %v722 = vadd.f32 0.0, %v721
  %v723 = vpop.f32.mrf.mxu0
  %724 = vmatprep.mubr.f32.mxu0 0.0
  %725 = vmatmul.mubr.f32.gmra.mxu0 %v605
  %v726 = vpop.f32.mrf.mxu0
  %v727 = vadd.f32 0.0, %v726
  %v728 = vpop.f32.mrf.mxu0
  %729 = vmatprep.mubr.f32.mxu0 0.0
  %730 = vmatmul.mubr.f32.gmra.mxu0 %v608
  %v731 = vpop.f32.mrf.mxu0
  %v732 = vadd.f32 0.0, %v731
  %v733 = vpop.f32.mrf.mxu0
  %734 = vmatprep.mubr.f32.mxu0 0.0
  %735 = vmatmul.mubr.f32.gmra.mxu0 %v611
  %v736 = vpop.f32.mrf.mxu0
  %v737 = vadd.f32 0.0, %v736
  %v738 = vpop.f32.mrf.mxu0
  %739 = vmatprep.mubr.f32.mxu0 0.0
  %740 = vmatmul.mubr.f32.gmra.mxu0 %v614
  %v741 = vpop.f32.mrf.mxu0
  %v742 = vadd.f32 0.0, %v741
  %v743 = vpop.f32.mrf.mxu0
  %744 = vmatprep.mubr.f32.mxu0 0.0
  %745 = vmatmul.mubr.f32.gmra.mxu0 %v617
  %v746 = vpop.f32.mrf.mxu0
  %v747 = vadd.f32 0.0, %v746
  %v748 = vpop.f32.mrf.mxu0
  %749 = vmatprep.mubr.f32.mxu0 0.0
  %750 = vmatmul.mubr.f32.gmra.mxu0 %v620
  %v751 = vpop.f32.mrf.mxu0
  %v752 = vadd.f32 0.0, %v751
  %v753 = vpop.f32.mrf.mxu0
  %754 = vmatprep.mubr.f32.mxu0 0.0
  %755 = vmatmul.mubr.f32.gmra.mxu0 %v623
  %v756 = vpop.f32.mrf.mxu0
  %v757 = vadd.f32 0.0, %v756
  %v758 = vpop.f32.mrf.mxu0
  %759 = vmatprep.mubr.f32.mxu0 0.0
  %760 = vmatmul.mubr.f32.gmra.mxu0 %v626
  %v761 = vpop.f32.mrf.mxu0
  %v762 = vadd.f32 0.0, %v761
  %v763 = vpop.f32.mrf.mxu0
  %764 = vmatprep.mubr.f32.mxu0 0.0
  %765 = vmatmul.mubr.f32.gmra.mxu0 %v629
  %v766 = vpop.f32.mrf.mxu0
  %v767 = vadd.f32 0.0, %v766
  %v768 = vpop.f32.mrf.mxu0
  %769 = vmatprep.mubr.f32.mxu0 0.0
  %770 = vmatmul.mubr.f32.gmra.mxu0 %v632
  %v771 = vpop.f32.mrf.mxu0
  %v772 = vadd.f32 0.0, %v771
  %v773 = vpop.f32.mrf.mxu0
  %774 = vmatprep.mubr.f32.mxu0 0.0
  %775 = vmatmul.mubr.f32.gmra.mxu0 %v635
  %v776 = vpop.f32.mrf.mxu0
  %v777 = vadd.f32 0.0, %v776
  %v778 = vpop.f32.mrf.mxu0
  %779 = vmatprep.mubr.f32.mxu0 0.0
  %780 = vmatmul.mubr.f32.gmra.mxu0 %v638
  %v781 = vpop.f32.mrf.mxu0
  %v782 = vadd.f32 0.0, %v781
  %v783 = vpop.f32.mrf.mxu0
  %784 = vdwg.mxu0
  %785 = vst.msk [vmem:[%s4] sm:$0xff] %vm554, %v707
  %786 = vst.msk [vmem:[%s4 + $0x8] sm:$0xff] %vm554, %v712
  %787 = vst.msk [vmem:[%s4 + $0x10] sm:$0xff] %vm554, %v717
  %788 = vst.msk [vmem:[%s4 + $0x18] sm:$0xff] %vm554, %v722
  %789 = vst.msk [vmem:[%s4 + $0x20] sm:$0xff] %vm554, %v727
  %790 = vst.msk [vmem:[%s4 + $0x28] sm:$0xff] %vm554, %v732
  %791 = vst.msk [vmem:[%s4 + $0x30] sm:$0xff] %vm554, %v737
  %792 = vst.msk [vmem:[%s4 + $0x38] sm:$0xff] %vm554, %v742
  %793 = vst.msk [vmem:[%s4 + $0x40] sm:$0xff] %vm554, %v747
  %794 = vst.msk [vmem:[%s4 + $0x48] sm:$0xff] %vm554, %v752
  %795 = vst.msk [vmem:[%s4 + $0x50] sm:$0xff] %vm554, %v757
  %796 = vst.msk [vmem:[%s4 + $0x58] sm:$0xff] %vm554, %v762
  %797 = vst.msk [vmem:[%s4 + $0x60] sm:$0xff] %vm554, %v767
  %798 = vst.msk [vmem:[%s4 + $0x68] sm:$0xff] %vm554, %v772
  %799 = vst.msk [vmem:[%s4 + $0x70] sm:$0xff] %vm554, %v777
  %800 = vst.msk [vmem:[%s4 + $0x78] sm:$0xff] %vm554, %v782
  %v801 = vld [vmem:[%s5] sm:$0x3]
  %v802 = vsel %vm554, %v707, 0.0
  %v803 = vsel %vm554, %v712, 0.0
  %v804 = vadd.f32 %v802, %v803
  %v805 = vsel %vm554, %v717, 0.0
  %v806 = vadd.f32 %v804, %v805
  %v807 = vsel %vm554, %v722, 0.0
  %v808 = vadd.f32 %v806, %v807
  %v809 = vsel %vm554, %v727, 0.0
  %v810 = vadd.f32 %v808, %v809
  %v811 = vsel %vm554, %v732, 0.0
  %v812 = vadd.f32 %v810, %v811
  %v813 = vsel %vm554, %v737, 0.0
  %v814 = vadd.f32 %v812, %v813
  %v815 = vsel %vm554, %v742, 0.0
  %v816 = vadd.f32 %v814, %v815
  %v817 = vsel %vm554, %v747, 0.0
  %v818 = vadd.f32 %v816, %v817
  %v819 = vsel %vm554, %v752, 0.0
  %v820 = vadd.f32 %v818, %v819
  %v821 = vsel %vm554, %v757, 0.0
  %v822 = vadd.f32 %v820, %v821
  %v823 = vsel %vm554, %v762, 0.0
  %v824 = vadd.f32 %v822, %v823
  %v825 = vsel %vm554, %v767, 0.0
  %v826 = vadd.f32 %v824, %v825
  %v827 = vsel %vm554, %v772, 0.0
  %v828 = vadd.f32 %v826, %v827
  %v829 = vsel %vm554, %v777, 0.0
  %v830 = vadd.f32 %v828, %v829
  %v831 = vsel %vm554, %v782, 0.0
  %v832 = vadd.f32 %v830, %v831
  %v833 = vrot.slane %v832, 4
  %v834 = vadd.f32 %v832, %v833
  %v835 = vrot.slane %v834, 2
  %v836 = vadd.f32 %v834, %v835
  %v837 = vrot.slane %v836, 1
  %v838 = vadd.f32 %v836, %v837
  %v839 = vmul.f32 %v707, %v707
  %v840 = vmul.f32 %v712, %v712
  %v841 = vmul.f32 %v717, %v717
  %v842 = vmul.f32 %v722, %v722
  %v843 = vmul.f32 %v727, %v727
  %v844 = vmul.f32 %v732, %v732
  %v845 = vmul.f32 %v737, %v737
  %v846 = vmul.f32 %v742, %v742
  %v847 = vmul.f32 %v747, %v747
  %v848 = vmul.f32 %v752, %v752
  %v849 = vmul.f32 %v757, %v757
  %v850 = vmul.f32 %v762, %v762
  %v851 = vmul.f32 %v767, %v767
  %v852 = vmul.f32 %v772, %v772
  %v853 = vmul.f32 %v777, %v777
  %v854 = vmul.f32 %v782, %v782
  %v855 = vsel %vm554, %v839, 0.0
  %v856 = vsel %vm554, %v840, 0.0
  %v857 = vadd.f32 %v855, %v856
  %v858 = vsel %vm554, %v841, 0.0
  %v859 = vadd.f32 %v857, %v858
  %v860 = vsel %vm554, %v842, 0.0
  %v861 = vadd.f32 %v859, %v860
  %v862 = vsel %vm554, %v843, 0.0
  %v863 = vadd.f32 %v861, %v862
  %v864 = vsel %vm554, %v844, 0.0
  %v865 = vadd.f32 %v863, %v864
  %v866 = vsel %vm554, %v845, 0.0
  %v867 = vadd.f32 %v865, %v866
  %v868 = vsel %vm554, %v846, 0.0
  %v869 = vadd.f32 %v867, %v868
  %v870 = vsel %vm554, %v847, 0.0
  %v871 = vadd.f32 %v869, %v870
  %v872 = vsel %vm554, %v848, 0.0
  %v873 = vadd.f32 %v871, %v872
  %v874 = vsel %vm554, %v849, 0.0
  %v875 = vadd.f32 %v873, %v874
  %v876 = vsel %vm554, %v850, 0.0
  %v877 = vadd.f32 %v875, %v876
  %v878 = vsel %vm554, %v851, 0.0
  %v879 = vadd.f32 %v877, %v878
  %v880 = vsel %vm554, %v852, 0.0
  %v881 = vadd.f32 %v879, %v880
  %v882 = vsel %vm554, %v853, 0.0
  %v883 = vadd.f32 %v881, %v882
  %v884 = vsel %vm554, %v854, 0.0
  %v885 = vadd.f32 %v883, %v884
  %v886 = vrot.slane %v885, 4
  %v887 = vadd.f32 %v885, %v886
  %v888 = vrot.slane %v887, 2
  %v889 = vadd.f32 %v887, %v888
  %v890 = vrot.slane %v889, 1
  %v891 = vadd.f32 %v889, %v890
  %vm892 = vcmask 1040384
  %v893 = vsel %vm892, %v838, %v891
  %v894 = vadd.f32 %v801, %v893
  %vm895 = vcmask 58368
  %896 = vst.msk [vmem:[%s5] sm:$0x3] %vm895, %v894
  // Predicated region
  $region22: #{residual_block_pallas.4} parent=0 // pred_check
    _
  $region23: #{residual_block_pallas.4} parent=0 // pred_check_branch
    %898 = sbr.rel (0) target = $region25
  $region24: #{residual_block_pallas.4} parent=0 // pred_region
    _
  $region25: #{residual_block_pallas.4} parent=0 // pred_fallthru
    _
  // Predicated region
  $region26: #{residual_block_pallas.4} parent=0 // pred_check
    _
  $region27: #{residual_block_pallas.4} parent=0 // pred_check_branch
    %900 = sbr.rel (0) target = $region29
  $region28: #{residual_block_pallas.4} parent=0 // pred_region
    _
  $region29: #{residual_block_pallas.4} parent=0 // pred_fallthru
    _
  // Predicated region
  $region30: #{residual_block_pallas.4} parent=0 // pred_check
    _
  $region31: #{residual_block_pallas.4} parent=0 // pred_check_branch
    %902 = sbr.rel (0) target = $region33
  $region32: #{residual_block_pallas.4} parent=0 // pred_region
    _
  $region33: #{residual_block_pallas.4} parent=0 // pred_fallthru
    _
  // Predicated region
  $region34: #{residual_block_pallas.4} parent=0 // pred_check
    _
  $region35: #{residual_block_pallas.4} parent=0 // pred_check_branch
    %904 = sbr.rel (0) target = $region37
  $region36: #{residual_block_pallas.4} parent=0 // pred_region
    _
  $region37: #{residual_block_pallas.4} parent=0 // pred_fallthru
    _

</llo_original>
